<compile_context>
chip_gen: v6e
topology: v6e:2x2x1
jax: 0.10.0
libtpu: 0.0.40
codegen_flags: <defaults>
</compile_context>

<pallas_src>
import functools

import jax
import jax.numpy as jnp
from jax.experimental import pallas as pl
from jax.experimental.pallas import tpu as pltpu

EPS = 1e-5  # nn.LayerNorm default eps

# Row indices inside the packed per-layer (8, E) vector slab.
_BFC, _G1, _B1, _BFF2, _G2, _B2 = 0, 1, 2, 3, 4, 5


def _layernorm(x, gamma, beta):
    mean = jnp.mean(x, axis=-1, keepdims=True)
    var = jnp.mean((x - mean) ** 2, axis=-1, keepdims=True)
    return (x - mean) * jax.lax.rsqrt(var + EPS) * gamma + beta


def encoder_kernel(heads, head_dim,
                   x_ref, pos_ref,
                   wq_ref, wk_ref, wv_ref, wfc_ref, wff1_ref, wff2_ref,
                   vec_ref, bff1_ref,
                   o_ref, acc_ref):
    layer = pl.program_id(1)
    embed = heads * head_dim
    scale = 1.0 / (embed ** 0.5)  # PyTorch module scales by embed_size ** 0.5

    # Load the input into the VMEM-resident carry only at the first layer.
    @pl.when(layer == 0)
    def _():
        acc_ref[...] = x_ref[0].astype(jnp.float32)

    x = acc_ref[...]                       # (S, E) activation carried across layers
    pos = pos_ref[0].astype(jnp.float32)   # (S, E)
    qk_in = x + pos                        # queries == keys == residual (hoisted once)

    vecs = vec_ref[0]                      # (8, E) packed per-layer vectors
    bfc = vecs[_BFC:_BFC + 1]
    g1, b1 = vecs[_G1:_G1 + 1], vecs[_B1:_B1 + 1]
    bff2 = vecs[_BFF2:_BFF2 + 1]
    g2, b2 = vecs[_G2:_G2 + 1], vecs[_B2:_B2 + 1]
    bff1 = bff1_ref[0]                     # (1, F)

    # ---- multi-head self-attention ----
    # Block-diagonal per-head projections as single (S,E)@(E,E) MXU matmuls.
    q = jnp.dot(qk_in, wq_ref[0], preferred_element_type=jnp.float32)   # (S, E)
    k = jnp.dot(qk_in, wk_ref[0], preferred_element_type=jnp.float32)
    v = jnp.dot(x, wv_ref[0], preferred_element_type=jnp.float32)

    seq = q.shape[0]
    qh = pltpu.einshape("shd->hsd", q.reshape(seq, heads, head_dim))     # (h, S, hd)
    kh = pltpu.einshape("shd->hsd", k.reshape(seq, heads, head_dim))
    vh = pltpu.einshape("shd->hsd", v.reshape(seq, heads, head_dim))

    energy = jnp.einsum("hqd,hkd->hqk", qh, kh,
                        preferred_element_type=jnp.float32) * scale      # (h, S, S)
    energy = energy - jnp.max(energy, axis=-1, keepdims=True)
    p = jnp.exp(energy)
    attn = p * pl.reciprocal(jnp.sum(p, axis=-1, keepdims=True), approx=True)
    ctx = jnp.einsum("hqk,hkd->hqd", attn, vh,
                     preferred_element_type=jnp.float32)                 # (h, S, hd)

    # fc_out with the head concat folded in: batched matmul then head-sum.
    proj = jnp.einsum("hqd,hde->hqe", ctx, wfc_ref[0],
                      preferred_element_type=jnp.float32)                # (h, S, E)
    attn_out = jnp.sum(proj, axis=0) + bfc                               # (S, E)

    # ---- residual + LayerNorm 1 ----
    x1 = _layernorm(attn_out + qk_in, g1, b1)

    # ---- feed-forward ----
    h1 = jnp.dot(x1, wff1_ref[0], preferred_element_type=jnp.float32) + bff1
    h1 = jnp.maximum(h1, 0.0)
    x2 = jnp.dot(h1, wff2_ref[0], preferred_element_type=jnp.float32) + bff2

    # ---- residual + LayerNorm 2 ----
    out = _layernorm(x2 + x1, g2, b2)
    acc_ref[...] = out
    # TODO(synk): nn.Dropout is identity in eval mode; no stochastic dropout here.

    @pl.when(layer == pl.num_programs(1) - 1)
    def _():
        o_ref[0] = out.astype(o_ref.dtype)


def _pack_params(layer_params, heads, head_dim):
    """Stack per-layer params along a leading layer axis in kernel-friendly layouts."""
    E = heads * head_dim
    eye = jnp.eye(heads, dtype=jnp.float32)

    def blockdiag_t(w):  # (hd, hd) torch layout -> block-diagonal (E, E), pre-transposed
        return jnp.kron(eye, w.T)

    wq = jnp.stack([blockdiag_t(p["wq"]) for p in layer_params])          # (L, E, E)
    wk = jnp.stack([blockdiag_t(p["wk"]) for p in layer_params])
    wv = jnp.stack([blockdiag_t(p["wv"]) for p in layer_params])
    wfc = jnp.stack([p["wfc"].T.reshape(heads, head_dim, E)
                     for p in layer_params])                              # (L, h, hd, E)
    wff1 = jnp.stack([p["wff1"].T for p in layer_params])                 # (L, E, F)
    wff2 = jnp.stack([p["wff2"].T for p in layer_params])                 # (L, F, E)

    def vec_slab(p):
        zero = jnp.zeros((E,), jnp.float32)
        return jnp.stack([p["bfc"], p["g1"], p["b1"],
                          p["bff2"], p["g2"], p["b2"], zero, zero])       # (8, E)

    vecs = jnp.stack([vec_slab(p) for p in layer_params])                 # (L, 8, E)
    bff1 = jnp.stack([p["bff1"][None, :] for p in layer_params])          # (L, 1, F)
    return wq, wk, wv, wfc, wff1, wff2, vecs, bff1


def encoder_forward(x, pos, layer_params, heads, head_dim):
    N, S, E = x.shape
    L = len(layer_params)
    wq, wk, wv, wfc, wff1, wff2, vecs, bff1 = _pack_params(layer_params, heads, head_dim)

    act_spec = pl.BlockSpec((1, S, E), lambda n, l: (n, 0, 0))

    def layer_spec(shape):
        nd = len(shape)
        return pl.BlockSpec((1,) + tuple(shape[1:]),
                            lambda n, l, _nd=nd: (l,) + (0,) * (_nd - 1))

    kernel = functools.partial(encoder_kernel, heads, head_dim)
    return pl.pallas_call(
        kernel,
        out_shape=jax.ShapeDtypeStruct((N, S, E), x.dtype),
        grid=(N, L),
        in_specs=[act_spec, act_spec,
                  layer_spec(wq.shape), layer_spec(wk.shape), layer_spec(wv.shape),
                  layer_spec(wfc.shape), layer_spec(wff1.shape), layer_spec(wff2.shape),
                  layer_spec(vecs.shape), layer_spec(bff1.shape)],
        out_specs=act_spec,
        scratch_shapes=[pltpu.VMEM((S, E), jnp.float32)],
        compiler_params=pltpu.CompilerParams(
            dimension_semantics=("parallel", "arbitrary")),
    )(x, pos, wq, wk, wv, wfc, wff1, wff2, vecs, bff1)


# ---------------------------- pure-JAX reference ----------------------------
def _layernorm_ref(x, g, b):
    mean = jnp.mean(x, axis=-1, keepdims=True)
    var = jnp.mean((x - mean) ** 2, axis=-1, keepdims=True)
    return (x - mean) / jnp.sqrt(var + EPS) * g + b


def _block_ref(q, k, v, p, heads, head_dim):
    N, S, E = q.shape
    qh = q.reshape(N, S, heads, head_dim) @ p["wq"].T
    kh = k.reshape(N, S, heads, head_dim) @ p["wk"].T
    vh = v.reshape(N, S, heads, head_dim) @ p["wv"].T
    energy = jnp.einsum("nqhd,nkhd->nhqk", qh, kh)
    attn = jax.nn.softmax(energy / (E ** 0.5), axis=3)
    out = jnp.einsum("nhql,nlhd->nqhd", attn, vh).reshape(N, S, E)
    out = out @ p["wfc"].T + p["bfc"]
    x1 = _layernorm_ref(out + q, p["g1"], p["b1"])
    h = jax.nn.relu(x1 @ p["wff1"].T + p["bff1"])
    x2 = h @ p["wff2"].T + p["bff2"]
    return _layernorm_ref(x2 + x1, p["g2"], p["b2"])


def _encoder_ref(x, pos, layer_params, heads, head_dim):
    out = x
    for p in layer_params:
        out = _block_ref(out + pos, out + pos, out, p, heads, head_dim)
    return out


# ------------------------------ parameter init ------------------------------
def init_layer_params(key, embed, heads, forward_expansion):
    hd = embed // heads
    F = embed * forward_expansion
    ks = jax.random.split(key, 10)

    def rnd(k, shape, fan_in):
        bound = 1.0 / (fan_in ** 0.5)
        return jax.random.uniform(k, shape, jnp.float32, -bound, bound)

    return {
        "wq": rnd(ks[0], (hd, hd), hd),
        "wk": rnd(ks[1], (hd, hd), hd),
        "wv": rnd(ks[2], (hd, hd), hd),
        "wfc": rnd(ks[3], (embed, embed), embed),
        "bfc": rnd(ks[4], (embed,), embed),
        "g1": jnp.ones((embed,), jnp.float32),
        "b1": jnp.zeros((embed,), jnp.float32),
        "wff1": rnd(ks[5], (F, embed), embed),
        "bff1": rnd(ks[6], (F,), embed),
        "wff2": rnd(ks[7], (embed, F), F),
        "bff2": rnd(ks[8], (embed,), F),
        "g2": jnp.ones((embed,), jnp.float32),
        "b2": jnp.zeros((embed,), jnp.float32),
    }


if __name__ == "__main__":
    # Shapes consistent with the module: Encoder(num_layers=2, embed=32, heads=4,
    # dropout=0.0, forward_expansion=2), input (batch=2, seq=8, embed=32).
    N, S, E = 2, 8, 32
    HEADS, FE, NUM_LAYERS = 4, 2, 2
    HD = E // HEADS

    key = jax.random.PRNGKey(0)
    kx, kp, kparams = jax.random.split(key, 3)
    x = jax.random.normal(kx, (N, S, E), jnp.float32)
    pos = jax.random.normal(kp, (N, S, E), jnp.float32)

    layer_params = [init_layer_params(jax.random.fold_in(kparams, l), E, HEADS, FE)
                    for l in range(NUM_LAYERS)]

    out = jax.block_until_ready(encoder_forward(x, pos, layer_params, HEADS, HD))
    ref = _encoder_ref(x, pos, layer_params, HEADS, HD)

    assert out.shape == (N, S, E)
    # Tolerance is loosened slightly vs exact f32 because the softmax denominator
    # uses the EUP approximate reciprocal (pl.reciprocal(..., approx=True)).
    err = jnp.max(jnp.abs(out - ref))
    assert jnp.allclose(out, ref, rtol=2e-2, atol=2e-2), f"max abs err {err}"
    print("KERNEL_OK")
</pallas_src>

<mosaic_0001>
module attributes {stable_mosaic.version = 11 : i64} {
  func.func @encoder_kernel(%arg0: i32, %arg1: i32, %arg2: memref<1x8x32xf32, #tpu.memory_space<vmem>>, %arg3: memref<1x8x32xf32, #tpu.memory_space<vmem>>, %arg4: memref<1x32x32xf32, #tpu.memory_space<vmem>>, %arg5: memref<1x32x32xf32, #tpu.memory_space<vmem>>, %arg6: memref<1x32x32xf32, #tpu.memory_space<vmem>>, %arg7: memref<1x4x8x32xf32, #tpu.memory_space<vmem>>, %arg8: memref<1x32x64xf32, #tpu.memory_space<vmem>>, %arg9: memref<1x64x32xf32, #tpu.memory_space<vmem>>, %arg10: memref<1x8x32xf32, #tpu.memory_space<vmem>>, %arg11: memref<1x1x64xf32, #tpu.memory_space<vmem>>, %arg12: memref<1x8x32xf32, #tpu.memory_space<vmem>>, %arg13: memref<8x32xf32, #tpu.memory_space<vmem>>) attributes {dimension_semantics = [#tpu.dimension_semantics<parallel>, #tpu.dimension_semantics<arbitrary>], iteration_bounds = array<i64: 2, 2>, scalar_prefetch = 0 : i64, scratch_operands = 1 : i64, tpu.core_type = #tpu.core_type<tc>, window_params = [{transform_indices = @transform_0, window_bounds = array<i64: 1, 8, 32>}, {transform_indices = @transform_1, window_bounds = array<i64: 1, 8, 32>}, {transform_indices = @transform_2, window_bounds = array<i64: 1, 32, 32>}, {transform_indices = @transform_3, window_bounds = array<i64: 1, 32, 32>}, {transform_indices = @transform_4, window_bounds = array<i64: 1, 32, 32>}, {transform_indices = @transform_5, window_bounds = array<i64: 1, 4, 8, 32>}, {transform_indices = @transform_6, window_bounds = array<i64: 1, 32, 64>}, {transform_indices = @transform_7, window_bounds = array<i64: 1, 64, 32>}, {transform_indices = @transform_8, window_bounds = array<i64: 1, 8, 32>}, {transform_indices = @transform_9, window_bounds = array<i64: 1, 1, 64>}, {transform_indices = @transform_10, window_bounds = array<i64: 1, 8, 32>}]} {
    %c0_i32 = arith.constant 0 : i32
    %0 = arith.cmpi eq, %arg1, %c0_i32 : i32
    %1 = arith.extui %0 : i1 to i32
    %c0_i32_0 = arith.constant 0 : i32
    %2 = arith.cmpi ne, %1, %c0_i32_0 : i32
    scf.if %2 {
      %c0_55 = arith.constant 0 : index
      %c0_56 = arith.constant 0 : index
      %c0_57 = arith.constant 0 : index
      %114 = vector.load %arg2[%c0_55, %c0_56, %c0_57] : memref<1x8x32xf32, #tpu.memory_space<vmem>>, vector<1x8x32xf32>
      %115 = vector.shape_cast %114 : vector<1x8x32xf32> to vector<8x32xf32>
      %c0_58 = arith.constant 0 : index
      %c0_59 = arith.constant 0 : index
      %116 = vector.load %arg13[%c0_58, %c0_59] : memref<8x32xf32, #tpu.memory_space<vmem>>, vector<8x32xf32>
      tpu.vector_store %arg13[%c0_58, %c0_59], %115 {strides = array<i32>} : memref<8x32xf32, #tpu.memory_space<vmem>>, vector<8x32xf32>,
    } else {
    }
    %c0 = arith.constant 0 : index
    %c0_1 = arith.constant 0 : index
    %3 = vector.load %arg13[%c0, %c0_1] : memref<8x32xf32, #tpu.memory_space<vmem>>, vector<8x32xf32>
    %c0_2 = arith.constant 0 : index
    %c0_3 = arith.constant 0 : index
    %c0_4 = arith.constant 0 : index
    %4 = vector.load %arg3[%c0_2, %c0_3, %c0_4] : memref<1x8x32xf32, #tpu.memory_space<vmem>>, vector<1x8x32xf32>
    %5 = vector.shape_cast %4 : vector<1x8x32xf32> to vector<8x32xf32>
    %6 = arith.addf %3, %5 : vector<8x32xf32>
    %c0_5 = arith.constant 0 : index
    %c0_6 = arith.constant 0 : index
    %c0_7 = arith.constant 0 : index
    %7 = vector.load %arg10[%c0_5, %c0_6, %c0_7] : memref<1x8x32xf32, #tpu.memory_space<vmem>>, vector<1x8x32xf32>
    %8 = vector.shape_cast %7 : vector<1x8x32xf32> to vector<8x32xf32>
    %9 = vector.extract_strided_slice %8 {offsets = [0, 0], sizes = [1, 32], strides = [1, 1]} : vector<8x32xf32> to vector<1x32xf32>
    %10 = vector.extract_strided_slice %8 {offsets = [1, 0], sizes = [1, 32], strides = [1, 1]} : vector<8x32xf32> to vector<1x32xf32>
    %11 = vector.extract_strided_slice %8 {offsets = [2, 0], sizes = [1, 32], strides = [1, 1]} : vector<8x32xf32> to vector<1x32xf32>
    %12 = vector.extract_strided_slice %8 {offsets = [3, 0], sizes = [1, 32], strides = [1, 1]} : vector<8x32xf32> to vector<1x32xf32>
    %13 = vector.extract_strided_slice %8 {offsets = [4, 0], sizes = [1, 32], strides = [1, 1]} : vector<8x32xf32> to vector<1x32xf32>
    %14 = vector.extract_strided_slice %8 {offsets = [5, 0], sizes = [1, 32], strides = [1, 1]} : vector<8x32xf32> to vector<1x32xf32>
    %c0_8 = arith.constant 0 : index
    %c0_9 = arith.constant 0 : index
    %c0_10 = arith.constant 0 : index
    %15 = vector.load %arg11[%c0_8, %c0_9, %c0_10] : memref<1x1x64xf32, #tpu.memory_space<vmem>>, vector<1x1x64xf32>
    %16 = vector.shape_cast %15 : vector<1x1x64xf32> to vector<1x64xf32>
    %c0_11 = arith.constant 0 : index
    %c0_12 = arith.constant 0 : index
    %c0_13 = arith.constant 0 : index
    %17 = vector.load %arg4[%c0_11, %c0_12, %c0_13] : memref<1x32x32xf32, #tpu.memory_space<vmem>>, vector<1x32x32xf32>
    %18 = vector.shape_cast %17 : vector<1x32x32xf32> to vector<32x32xf32>
    %cst = arith.constant dense<0.000000e+00> : vector<8x32xf32>
    %19 = tpu.matmul %6, %18, %cst {dimension_numbers = #tpu.dot_dimension_numbers<[1], [0], [0], [1], [0, 0, 1, 1], [], []>} : vector<8x32xf32>, vector<32x32xf32>, vector<8x32xf32> -> vector<8x32xf32>
    %c0_14 = arith.constant 0 : index
    %c0_15 = arith.constant 0 : index
    %c0_16 = arith.constant 0 : index
    %20 = vector.load %arg5[%c0_14, %c0_15, %c0_16] : memref<1x32x32xf32, #tpu.memory_space<vmem>>, vector<1x32x32xf32>
    %21 = vector.shape_cast %20 : vector<1x32x32xf32> to vector<32x32xf32>
    %cst_17 = arith.constant dense<0.000000e+00> : vector<8x32xf32>
    %22 = tpu.matmul %6, %21, %cst_17 {dimension_numbers = #tpu.dot_dimension_numbers<[1], [0], [0], [1], [0, 0, 1, 1], [], []>} : vector<8x32xf32>, vector<32x32xf32>, vector<8x32xf32> -> vector<8x32xf32>
    %c0_18 = arith.constant 0 : index
    %c0_19 = arith.constant 0 : index
    %c0_20 = arith.constant 0 : index
    %23 = vector.load %arg6[%c0_18, %c0_19, %c0_20] : memref<1x32x32xf32, #tpu.memory_space<vmem>>, vector<1x32x32xf32>
    %24 = vector.shape_cast %23 : vector<1x32x32xf32> to vector<32x32xf32>
    %cst_21 = arith.constant dense<0.000000e+00> : vector<8x32xf32>
    %25 = tpu.matmul %3, %24, %cst_21 {dimension_numbers = #tpu.dot_dimension_numbers<[1], [0], [0], [1], [0, 0, 1, 1], [], []>} : vector<8x32xf32>, vector<32x32xf32>, vector<8x32xf32> -> vector<8x32xf32>
    %26 = vector.shape_cast %19 : vector<8x32xf32> to vector<8x4x8xf32>
    %27 = tpu.transpose %26, [1, 0, 2] : vector<8x4x8xf32> -> vector<4x8x8xf32>
    %28 = vector.shape_cast %22 : vector<8x32xf32> to vector<8x4x8xf32>
    %29 = tpu.transpose %28, [1, 0, 2] : vector<8x4x8xf32> -> vector<4x8x8xf32>
    %30 = vector.shape_cast %25 : vector<8x32xf32> to vector<8x4x8xf32>
    %31 = tpu.transpose %30, [1, 0, 2] : vector<8x4x8xf32> -> vector<4x8x8xf32>
    "tpu.trace_start"() <{level = 10 : i32, message = "hqd,hkd->hqk"}> : () -> ()
    %cst_22 = arith.constant dense<0.000000e+00> : vector<4x8x8xf32>
    %32 = tpu.matmul %27, %29, %cst_22 {dimension_numbers = #tpu.dot_dimension_numbers<[2], [2], [1], [1], [0, 0, 0, 1, 1, 1], [0], [0]>} : vector<4x8x8xf32>, vector<4x8x8xf32>, vector<4x8x8xf32> -> vector<4x8x8xf32>
    "tpu.trace_stop"() : () -> ()
    %cst_23 = arith.constant 0.176776692 : f32
    %33 = vector.broadcast %cst_23 : f32 to vector<4x8x8xf32>
    %34 = arith.mulf %32, %33 : vector<4x8x8xf32>
    %cst_24 = arith.constant dense<0xFF800000> : vector<4x8xf32>
    %35 = vector.multi_reduction <maximumf>, %34, %cst_24 [2] : vector<4x8x8xf32> to vector<4x8xf32>
    %36 = vector.shape_cast %35 : vector<4x8xf32> to vector<4x8x1xf32>
    %37 = vector.broadcast %36 : vector<4x8x1xf32> to vector<4x8x8xf32>
    %38 = arith.subf %34, %37 : vector<4x8x8xf32>
    %39 = math.exp %38 : vector<4x8x8xf32>
    %cst_25 = arith.constant dense<0.000000e+00> : vector<4x8xf32>
    %40 = vector.multi_reduction <add>, %39, %cst_25 [2] : vector<4x8x8xf32> to vector<4x8xf32>
    %41 = vector.shape_cast %40 : vector<4x8xf32> to vector<4x8x1xf32>
    %42 = tpu.reciprocal %41 {approx = true} : vector<4x8x1xf32> -> vector<4x8x1xf32>
    %43 = vector.broadcast %42 : vector<4x8x1xf32> to vector<4x8x8xf32>
    %44 = arith.mulf %39, %43 : vector<4x8x8xf32>
    "tpu.trace_start"() <{level = 10 : i32, message = "hqk,hkd->hqd"}> : () -> ()
    %cst_26 = arith.constant dense<0.000000e+00> : vector<4x8x8xf32>
    %45 = tpu.matmul %44, %31, %cst_26 {dimension_numbers = #tpu.dot_dimension_numbers<[2], [1], [1], [2], [0, 0, 0, 1, 1, 2], [0], [0]>} : vector<4x8x8xf32>, vector<4x8x8xf32>, vector<4x8x8xf32> -> vector<4x8x8xf32>
    "tpu.trace_stop"() : () -> ()
    %c0_27 = arith.constant 0 : index
    %c0_28 = arith.constant 0 : index
    %c0_29 = arith.constant 0 : index
    %c0_30 = arith.constant 0 : index
    %46 = vector.load %arg7[%c0_27, %c0_28, %c0_29, %c0_30] : memref<1x4x8x32xf32, #tpu.memory_space<vmem>>, vector<1x4x8x32xf32>
    %47 = vector.shape_cast %46 : vector<1x4x8x32xf32> to vector<4x8x32xf32>
    "tpu.trace_start"() <{level = 10 : i32, message = "hqd,hde->hqe"}> : () -> ()
    %cst_31 = arith.constant dense<0.000000e+00> : vector<4x8x32xf32>
    %48 = tpu.matmul %45, %47, %cst_31 {dimension_numbers = #tpu.dot_dimension_numbers<[2], [1], [1], [2], [0, 0, 0, 1, 1, 2], [0], [0]>} : vector<4x8x8xf32>, vector<4x8x32xf32>, vector<4x8x32xf32> -> vector<4x8x32xf32>
    "tpu.trace_stop"() : () -> ()
    %cst_32 = arith.constant dense<0.000000e+00> : vector<8x32xf32>
    %49 = vector.multi_reduction <add>, %48, %cst_32 [0] : vector<4x8x32xf32> to vector<8x32xf32>
    %50 = vector.broadcast %9 : vector<1x32xf32> to vector<8x32xf32>
    %51 = arith.addf %49, %50 : vector<8x32xf32>
    %52 = arith.addf %51, %6 : vector<8x32xf32>
    %cst_33 = arith.constant dense<0.000000e+00> : vector<8xf32>
    %53 = vector.multi_reduction <add>, %52, %cst_33 [1] : vector<8x32xf32> to vector<8xf32>
    %54 = vector.shape_cast %53 : vector<8xf32> to vector<8x1xf32>
    %cst_34 = arith.constant 3.200000e+01 : f32
    %55 = vector.broadcast %cst_34 : f32 to vector<8x1xf32>
    %56 = arith.divf %54, %55 : vector<8x1xf32>
    %57 = vector.broadcast %56 : vector<8x1xf32> to vector<8x32xf32>
    %58 = arith.subf %52, %57 : vector<8x32xf32>
    %59 = arith.mulf %58, %58 : vector<8x32xf32>
    %cst_35 = arith.constant dense<0.000000e+00> : vector<8xf32>
    %60 = vector.multi_reduction <add>, %59, %cst_35 [1] : vector<8x32xf32> to vector<8xf32>
    %61 = vector.shape_cast %60 : vector<8xf32> to vector<8x1xf32>
    %cst_36 = arith.constant 3.200000e+01 : f32
    %62 = vector.broadcast %cst_36 : f32 to vector<8x1xf32>
    %63 = arith.divf %61, %62 : vector<8x1xf32>
    %64 = vector.broadcast %56 : vector<8x1xf32> to vector<8x32xf32>
    %65 = arith.subf %52, %64 : vector<8x32xf32>
    %cst_37 = arith.constant 9.99999974E-6 : f32
    %66 = vector.broadcast %cst_37 : f32 to vector<8x1xf32>
    %67 = arith.addf %63, %66 : vector<8x1xf32>
    %68 = math.rsqrt %67 : vector<8x1xf32>
    %69 = vector.broadcast %68 : vector<8x1xf32> to vector<8x32xf32>
    %70 = arith.mulf %65, %69 : vector<8x32xf32>
    %71 = vector.broadcast %10 : vector<1x32xf32> to vector<8x32xf32>
    %72 = arith.mulf %70, %71 : vector<8x32xf32>
    %73 = vector.broadcast %11 : vector<1x32xf32> to vector<8x32xf32>
    %74 = arith.addf %72, %73 : vector<8x32xf32>
    %c0_38 = arith.constant 0 : index
    %c0_39 = arith.constant 0 : index
    %c0_40 = arith.constant 0 : index
    %75 = vector.load %arg8[%c0_38, %c0_39, %c0_40] : memref<1x32x64xf32, #tpu.memory_space<vmem>>, vector<1x32x64xf32>
    %76 = vector.shape_cast %75 : vector<1x32x64xf32> to vector<32x64xf32>
    %cst_41 = arith.constant dense<0.000000e+00> : vector<8x64xf32>
    %77 = tpu.matmul %74, %76, %cst_41 {dimension_numbers = #tpu.dot_dimension_numbers<[1], [0], [0], [1], [0, 0, 1, 1], [], []>} : vector<8x32xf32>, vector<32x64xf32>, vector<8x64xf32> -> vector<8x64xf32>
    %78 = vector.broadcast %16 : vector<1x64xf32> to vector<8x64xf32>
    %79 = arith.addf %77, %78 : vector<8x64xf32>
    %cst_42 = arith.constant 0.000000e+00 : f32
    %80 = vector.broadcast %cst_42 : f32 to vector<8x64xf32>
    %81 = arith.maximumf %79, %80 : vector<8x64xf32>
    %c0_43 = arith.constant 0 : index
    %c0_44 = arith.constant 0 : index
    %c0_45 = arith.constant 0 : index
    %82 = vector.load %arg9[%c0_43, %c0_44, %c0_45] : memref<1x64x32xf32, #tpu.memory_space<vmem>>, vector<1x64x32xf32>
    %83 = vector.shape_cast %82 : vector<1x64x32xf32> to vector<64x32xf32>
    %cst_46 = arith.constant dense<0.000000e+00> : vector<8x32xf32>
    %84 = tpu.matmul %81, %83, %cst_46 {dimension_numbers = #tpu.dot_dimension_numbers<[1], [0], [0], [1], [0, 0, 1, 1], [], []>} : vector<8x64xf32>, vector<64x32xf32>, vector<8x32xf32> -> vector<8x32xf32>
    %85 = vector.broadcast %12 : vector<1x32xf32> to vector<8x32xf32>
    %86 = arith.addf %84, %85 : vector<8x32xf32>
    %87 = arith.addf %86, %74 : vector<8x32xf32>
    %cst_47 = arith.constant dense<0.000000e+00> : vector<8xf32>
    %88 = vector.multi_reduction <add>, %87, %cst_47 [1] : vector<8x32xf32> to vector<8xf32>
    %89 = vector.shape_cast %88 : vector<8xf32> to vector<8x1xf32>
    %cst_48 = arith.constant 3.200000e+01 : f32
    %90 = vector.broadcast %cst_48 : f32 to vector<8x1xf32>
    %91 = arith.divf %89, %90 : vector<8x1xf32>
    %92 = vector.broadcast %91 : vector<8x1xf32> to vector<8x32xf32>
    %93 = arith.subf %87, %92 : vector<8x32xf32>
    %94 = arith.mulf %93, %93 : vector<8x32xf32>
    %cst_49 = arith.constant dense<0.000000e+00> : vector<8xf32>
    %95 = vector.multi_reduction <add>, %94, %cst_49 [1] : vector<8x32xf32> to vector<8xf32>
    %96 = vector.shape_cast %95 : vector<8xf32> to vector<8x1xf32>
    %cst_50 = arith.constant 3.200000e+01 : f32
    %97 = vector.broadcast %cst_50 : f32 to vector<8x1xf32>
    %98 = arith.divf %96, %97 : vector<8x1xf32>
    %99 = vector.broadcast %91 : vector<8x1xf32> to vector<8x32xf32>
    %100 = arith.subf %87, %99 : vector<8x32xf32>
    %cst_51 = arith.constant 9.99999974E-6 : f32
    %101 = vector.broadcast %cst_51 : f32 to vector<8x1xf32>
    %102 = arith.addf %98, %101 : vector<8x1xf32>
    %103 = math.rsqrt %102 : vector<8x1xf32>
    %104 = vector.broadcast %103 : vector<8x1xf32> to vector<8x32xf32>
    %105 = arith.mulf %100, %104 : vector<8x32xf32>
    %106 = vector.broadcast %13 : vector<1x32xf32> to vector<8x32xf32>
    %107 = arith.mulf %105, %106 : vector<8x32xf32>
    %108 = vector.broadcast %14 : vector<1x32xf32> to vector<8x32xf32>
    %109 = arith.addf %107, %108 : vector<8x32xf32>
    %c0_52 = arith.constant 0 : index
    %c0_53 = arith.constant 0 : index
    %110 = vector.load %arg13[%c0_52, %c0_53] : memref<8x32xf32, #tpu.memory_space<vmem>>, vector<8x32xf32>
    tpu.vector_store %arg13[%c0_52, %c0_53], %109 {strides = array<i32>} : memref<8x32xf32, #tpu.memory_space<vmem>>, vector<8x32xf32>,
    %c1_i32 = arith.constant 1 : i32
    %111 = arith.cmpi eq, %arg1, %c1_i32 : i32
    %112 = arith.extui %111 : i1 to i32
    %c0_i32_54 = arith.constant 0 : i32
    %113 = arith.cmpi ne, %112, %c0_i32_54 : i32
    scf.if %113 {
      %c0_55 = arith.constant 0 : index
      %c0_56 = arith.constant 0 : index
      %c0_57 = arith.constant 0 : index
      %114 = vector.load %arg12[%c0_55, %c0_56, %c0_57] : memref<1x8x32xf32, #tpu.memory_space<vmem>>, vector<1x8x32xf32>
      %115 = vector.shape_cast %114 : vector<1x8x32xf32> to vector<8x32xf32>
      %116 = vector.shape_cast %109 : vector<8x32xf32> to vector<1x8x32xf32>
      tpu.vector_store %arg12[%c0_55, %c0_56, %c0_57], %116 {strides = array<i32>} : memref<1x8x32xf32, #tpu.memory_space<vmem>>, vector<1x8x32xf32>,
    } else {
    }
    return
  }
  func.func @transform_0(%arg0: i32, %arg1: i32) -> (i32, i32, i32) {
    %c0_i32 = arith.constant 0 : i32
    %c0_i32_0 = arith.constant 0 : i32
    %c0_i32_1 = arith.constant 0 : i32
    return %arg0, %c0_i32, %c0_i32_0 : i32, i32, i32
  }
  func.func @transform_1(%arg0: i32, %arg1: i32) -> (i32, i32, i32) {
    %c0_i32 = arith.constant 0 : i32
    %c0_i32_0 = arith.constant 0 : i32
    %c0_i32_1 = arith.constant 0 : i32
    return %arg0, %c0_i32, %c0_i32_0 : i32, i32, i32
  }
  func.func @transform_2(%arg0: i32, %arg1: i32) -> (i32, i32, i32) {
    %c0_i32 = arith.constant 0 : i32
    %c0_i32_0 = arith.constant 0 : i32
    %c0_i32_1 = arith.constant 0 : i32
    return %arg1, %c0_i32, %c0_i32_0 : i32, i32, i32
  }
  func.func @transform_3(%arg0: i32, %arg1: i32) -> (i32, i32, i32) {
    %c0_i32 = arith.constant 0 : i32
    %c0_i32_0 = arith.constant 0 : i32
    %c0_i32_1 = arith.constant 0 : i32
    return %arg1, %c0_i32, %c0_i32_0 : i32, i32, i32
  }
  func.func @transform_4(%arg0: i32, %arg1: i32) -> (i32, i32, i32) {
    %c0_i32 = arith.constant 0 : i32
    %c0_i32_0 = arith.constant 0 : i32
    %c0_i32_1 = arith.constant 0 : i32
    return %arg1, %c0_i32, %c0_i32_0 : i32, i32, i32
  }
  func.func @transform_5(%arg0: i32, %arg1: i32) -> (i32, i32, i32, i32) {
    %c0_i32 = arith.constant 0 : i32
    %c0_i32_0 = arith.constant 0 : i32
    %c0_i32_1 = arith.constant 0 : i32
    %c0_i32_2 = arith.constant 0 : i32
    return %arg1, %c0_i32, %c0_i32_0, %c0_i32_1 : i32, i32, i32, i32
  }
  func.func @transform_6(%arg0: i32, %arg1: i32) -> (i32, i32, i32) {
    %c0_i32 = arith.constant 0 : i32
    %c0_i32_0 = arith.constant 0 : i32
    %c0_i32_1 = arith.constant 0 : i32
    return %arg1, %c0_i32, %c0_i32_0 : i32, i32, i32
  }
  func.func @transform_7(%arg0: i32, %arg1: i32) -> (i32, i32, i32) {
    %c0_i32 = arith.constant 0 : i32
    %c0_i32_0 = arith.constant 0 : i32
    %c0_i32_1 = arith.constant 0 : i32
    return %arg1, %c0_i32, %c0_i32_0 : i32, i32, i32
  }
  func.func @transform_8(%arg0: i32, %arg1: i32) -> (i32, i32, i32) {
    %c0_i32 = arith.constant 0 : i32
    %c0_i32_0 = arith.constant 0 : i32
    %c0_i32_1 = arith.constant 0 : i32
    return %arg1, %c0_i32, %c0_i32_0 : i32, i32, i32
  }
  func.func @transform_9(%arg0: i32, %arg1: i32) -> (i32, i32, i32) {
    %c0_i32 = arith.constant 0 : i32
    %c0_i32_0 = arith.constant 0 : i32
    %c0_i32_1 = arith.constant 0 : i32
    return %arg1, %c0_i32, %c0_i32_0 : i32, i32, i32
  }
  func.func @transform_10(%arg0: i32, %arg1: i32) -> (i32, i32, i32) {
    %c0_i32 = arith.constant 0 : i32
    %c0_i32_0 = arith.constant 0 : i32
    %c0_i32_1 = arith.constant 0 : i32
    return %arg0, %c0_i32, %c0_i32_0 : i32, i32, i32
  }
}

</mosaic_0001>

<llo_original>
// kernel: tpu_custom_call.1
$region0: #{tpu_custom_call.1}
  #allocation0 [shape = 'u32[]', space=smem, size = 0x4, offset = 0x4, fixed_abs, tag = 'smem constant byte address 0x4 - core index']
  #allocation1 [shape = 'u32[144,128]{1,0:T(1,128)}', space=vmem, size = 0x12000, scoped, tag = 'internal scratch']
  #allocation2 [shape = 'f32[8,32]{1,0:T(8,128)}', space=vmem, size = 0x1000, scoped, tag = 'scratch operand']
  %s0 = inlined_call_operand.hbm [shape: f32[2,8,32], index: 0, kind: input, shape index: {}]
  %s1 = inlined_call_operand.hbm [shape: f32[2,8,32], index: 1, kind: input, shape index: {}]
  %s2 = inlined_call_operand.vmem [shape: f32[2,32,32], index: 2, kind: input, shape index: {}]
  %s3 = inlined_call_operand.vmem [shape: f32[2,32,32], index: 3, kind: input, shape index: {}]
  %s4 = inlined_call_operand.vmem [shape: f32[2,32,32], index: 4, kind: input, shape index: {}]
  %s5 = inlined_call_operand.hbm [shape: f32[2,4,8,32], index: 5, kind: input, shape index: {}]
  %s6 = inlined_call_operand.hbm [shape: f32[2,32,64], index: 6, kind: input, shape index: {}]
  %s7 = inlined_call_operand.vmem [shape: f32[2,64,32], index: 7, kind: input, shape index: {}]
  %s8 = inlined_call_operand.hbm [shape: f32[2,8,32], index: 8, kind: input, shape index: {}]
  %s9 = inlined_call_operand.vmem [shape: f32[2,1,64], index: 9, kind: input, shape index: {}]
  %s10 = inlined_call_operand.hbm [shape: f32[2,8,32], index: 10, kind: output, shape index: {}]
  %s11 = sld [smem:[#allocation0]]
  $region101: #{tpu_custom_call.1} parent=0
    _
  %s13 = ssub.s32 1, %s11
  %s14 = scalar_select 0, %s13, %s11
  $region1: #{tpu_custom_call.1} parent=0
    #allocation3 [shape = 'u8[8192]{0}', space=vmem, size = 0x2000, scoped, tag = 'input window, operand 0']
    #allocation4 [shape = 's32[2]{0}', space=sflag, size = 0x8, scoped, tag = 'scoped memory for tpu_custom_call.1']
    #allocation5 [shape = 's32[2]{0}', space=sflag, size = 0x8, scoped, tag = 'scoped memory for tpu_custom_call.1']
    #allocation6 [shape = 'u8[8192]{0}', space=vmem, size = 0x2000, scoped, tag = 'input window, operand 1']
    #allocation7 [shape = 's32[2]{0}', space=sflag, size = 0x8, scoped, tag = 'scoped memory for tpu_custom_call.1']
    #allocation8 [shape = 'u8[32768]{0}', space=vmem, size = 0x8000, scoped, tag = 'input window, operand 5']
    #allocation9 [shape = 'u8[32768]{0}', space=vmem, size = 0x8000, scoped, tag = 'input window, operand 6']
    #allocation10 [shape = 's32[2]{0}', space=sflag, size = 0x8, scoped, tag = 'scoped memory for tpu_custom_call.1']
    #allocation11 [shape = 'u8[8192]{0}', space=vmem, size = 0x2000, scoped, tag = 'input window, operand 8']
    #allocation12 [shape = 'u8[8192]{0}', space=vmem, size = 0x2000, scoped, tag = 'output window, operand 0']
    %15 = vsyncpa [#allocation4], 0
    %s16 = scalar_lea.sflag [#allocation4], 1
    %17 = vsyncpa %s16, 0
    %18 = vsyncpa [#allocation7], 0
    %s19 = scalar_lea.sflag [#allocation7], 1
    %20 = vsyncpa %s19, 0
    %21 = vsyncpa [#allocation10], 0
    %s22 = scalar_lea.sflag [#allocation10], 1
    %23 = vsyncpa %s22, 0
    %24 = vsyncpa [#allocation5], 0
    %s25 = scalar_lea.sflag [#allocation5], 1
    %26 = vsyncpa %s25, 0
    loop: start=0, step=1, limit=6
    $region2: #{tpu_custom_call.1} parent=1 // loop_pre_header
      _
    $region3: #{tpu_custom_call.1} parent=1 // loop_header
      %s28 = sphi 0, %s32
      %p29 = scmp.ge.s32.totalorder %s28, 6
      %s35 = sphi 0, %s47
      %s36 = sphi 0, %s43
      %s37 = sphi 0, %s35
      %s38 = sphi 0, %s36
      %s39 = sphi 0, %s37
      %s40 = sphi 0, %s38
      %s50 = sphi 0, %s52
      %s53 = sphi 0, %s50
      %s54 = sphi 0, %s53
      %s70 = sphi 0, %s54
      %s76 = sphi 0, %s78
      %s79 = sphi 0, %s76
      %s80 = sphi 0, %s79
      %s96 = sphi 0, %s80
      %s102 = sphi 0, %s104
      %s105 = sphi 0, %s102
      %s106 = sphi 0, %s105
      %s122 = sphi 0, %s106
      %s128 = sphi 0, %s130
      %s131 = sphi 0, %s128
      %s132 = sphi 0, %s131
      %s148 = sphi 0, %s132
      %s154 = sphi 0, %s156
      %s157 = sphi 0, %s154
      %s158 = sphi 0, %s157
      %s174 = sphi 0, %s158
      %s180 = sphi 0, %s182
      %s183 = sphi 0, %s180
      %s184 = sphi 0, %s183
      %s200 = sphi 0, %s184
      %s206 = sphi 0, %s208
      %s209 = sphi 0, %s206
      %s210 = sphi 0, %s209
      %s226 = sphi 0, %s210
      %s232 = sphi 0, %s234
      %s235 = sphi 0, %s232
      %s236 = sphi 0, %s235
      %s252 = sphi 0, %s236
      %s258 = sphi 0, %s260
      %s261 = sphi 0, %s258
      %s262 = sphi 0, %s261
      %s278 = sphi 0, %s262
      %s284 = sphi 0, %s286
      %s287 = sphi 0, %s284
      %s288 = sphi 0, %s287
      %s304 = sphi 0, %s288
      %s310 = sphi 0, %s312
      %s313 = sphi 0, %s310
      %s314 = sphi 0, %s313
      %s330 = sphi 0, %s314
    $region4: #{tpu_custom_call.1} parent=1 // loop_header_branch
      %31 = sbr.rel (%p29) target = $region8
    $region5: #{tpu_custom_call.1} parent=1 // loop_body
      %s33 = ssub.s32 %s28, 1
      %s34 = ssub.s32 %s28, 2
      %s41 = sadd.s32 1, %s36
      %p42 = scmp.ge.s32.totalorder %s41, 2
      %s43 = scalar_select %p42, 0, %s41
      %s44 = sadd.s32 1, %s35
      %s45 = scalar_select %p42, %s44, %s35
      %p46 = scmp.ge.s32.totalorder %s45, 2
      %s47 = scalar_select %p46, 0, %s45
      %s48 = ssub.s32 %s35, %s47
      %p49 = scmp.eq.s32.totalorder %s48, 0
      %s51 = sadd.s32 %s50, 1
      %s52 = scalar_select %p49, %s50, %s51
      %p55 = pneg %p49
      %p56 = scmp.eq.s32.totalorder %s28, 3
      %p57 = por %p55, %p56
      %p58 = scmp.ne.s32.totalorder %s50, %s53
      %p59 = scmp.eq.s32.totalorder %s28, 0
      %p60 = por %p58, %p59
      %p61 = scmp.ne.s32.totalorder %s50, %s53
      %p62 = scmp.eq.s32.totalorder %s33, 3
      %p63 = por %p61, %p62
      %p64 = scmp.ne.s32.totalorder %s53, %s54
      %p65 = scmp.eq.s32.totalorder %s33, 0
      %p66 = por %p64, %p65
      %p67 = scmp.ne.s32.totalorder %s53, %s54
      %p68 = scmp.eq.s32.totalorder %s34, 3
      %p69 = por %p67, %p68
      %p71 = scmp.ne.s32.totalorder %s54, %s70
      %p72 = scmp.eq.s32.totalorder %s34, 0
      %p73 = por %p71, %p72
      %s74 = ssub.s32 %s35, %s47
      %p75 = scmp.eq.s32.totalorder %s74, 0
      %s77 = sadd.s32 %s76, 1
      %s78 = scalar_select %p75, %s76, %s77
      %p81 = pneg %p75
      %p82 = scmp.eq.s32.totalorder %s28, 3
      %p83 = por %p81, %p82
      %p84 = scmp.ne.s32.totalorder %s76, %s79
      %p85 = scmp.eq.s32.totalorder %s28, 0
      %p86 = por %p84, %p85
      %p87 = scmp.ne.s32.totalorder %s76, %s79
      %p88 = scmp.eq.s32.totalorder %s33, 3
      %p89 = por %p87, %p88
      %p90 = scmp.ne.s32.totalorder %s79, %s80
      %p91 = scmp.eq.s32.totalorder %s33, 0
      %p92 = por %p90, %p91
      %p93 = scmp.ne.s32.totalorder %s79, %s80
      %p94 = scmp.eq.s32.totalorder %s34, 3
      %p95 = por %p93, %p94
      %p97 = scmp.ne.s32.totalorder %s80, %s96
      %p98 = scmp.eq.s32.totalorder %s34, 0
      %p99 = por %p97, %p98
      %s100 = ssub.s32 %s36, %s43
      %p101 = scmp.eq.s32.totalorder %s100, 0
      %s103 = sadd.s32 %s102, 1
      %s104 = scalar_select %p101, %s102, %s103
      %p107 = pneg %p101
      %p108 = scmp.eq.s32.totalorder %s28, 3
      %p109 = por %p107, %p108
      %p110 = scmp.ne.s32.totalorder %s102, %s105
      %p111 = scmp.eq.s32.totalorder %s28, 0
      %p112 = por %p110, %p111
      %p113 = scmp.ne.s32.totalorder %s102, %s105
      %p114 = scmp.eq.s32.totalorder %s33, 3
      %p115 = por %p113, %p114
      %p116 = scmp.ne.s32.totalorder %s105, %s106
      %p117 = scmp.eq.s32.totalorder %s33, 0
      %p118 = por %p116, %p117
      %p119 = scmp.ne.s32.totalorder %s105, %s106
      %p120 = scmp.eq.s32.totalorder %s34, 3
      %p121 = por %p119, %p120
      %p123 = scmp.ne.s32.totalorder %s106, %s122
      %p124 = scmp.eq.s32.totalorder %s34, 0
      %p125 = por %p123, %p124
      %s126 = ssub.s32 %s36, %s43
      %p127 = scmp.eq.s32.totalorder %s126, 0
      %s129 = sadd.s32 %s128, 1
      %s130 = scalar_select %p127, %s128, %s129
      %p133 = pneg %p127
      %p134 = scmp.eq.s32.totalorder %s28, 3
      %p135 = por %p133, %p134
      %p136 = scmp.ne.s32.totalorder %s128, %s131
      %p137 = scmp.eq.s32.totalorder %s28, 0
      %p138 = por %p136, %p137
      %p139 = scmp.ne.s32.totalorder %s128, %s131
      %p140 = scmp.eq.s32.totalorder %s33, 3
      %p141 = por %p139, %p140
      %p142 = scmp.ne.s32.totalorder %s131, %s132
      %p143 = scmp.eq.s32.totalorder %s33, 0
      %p144 = por %p142, %p143
      %p145 = scmp.ne.s32.totalorder %s131, %s132
      %p146 = scmp.eq.s32.totalorder %s34, 3
      %p147 = por %p145, %p146
      %p149 = scmp.ne.s32.totalorder %s132, %s148
      %p150 = scmp.eq.s32.totalorder %s34, 0
      %p151 = por %p149, %p150
      %s152 = ssub.s32 %s36, %s43
      %p153 = scmp.eq.s32.totalorder %s152, 0
      %s155 = sadd.s32 %s154, 1
      %s156 = scalar_select %p153, %s154, %s155
      %p159 = pneg %p153
      %p160 = scmp.eq.s32.totalorder %s28, 3
      %p161 = por %p159, %p160
      %p162 = scmp.ne.s32.totalorder %s154, %s157
      %p163 = scmp.eq.s32.totalorder %s28, 0
      %p164 = por %p162, %p163
      %p165 = scmp.ne.s32.totalorder %s154, %s157
      %p166 = scmp.eq.s32.totalorder %s33, 3
      %p167 = por %p165, %p166
      %p168 = scmp.ne.s32.totalorder %s157, %s158
      %p169 = scmp.eq.s32.totalorder %s33, 0
      %p170 = por %p168, %p169
      %p171 = scmp.ne.s32.totalorder %s157, %s158
      %p172 = scmp.eq.s32.totalorder %s34, 3
      %p173 = por %p171, %p172
      %p175 = scmp.ne.s32.totalorder %s158, %s174
      %p176 = scmp.eq.s32.totalorder %s34, 0
      %p177 = por %p175, %p176
      %s178 = ssub.s32 %s36, %s43
      %p179 = scmp.eq.s32.totalorder %s178, 0
      %s181 = sadd.s32 %s180, 1
      %s182 = scalar_select %p179, %s180, %s181
      %p185 = pneg %p179
      %p186 = scmp.eq.s32.totalorder %s28, 3
      %p187 = por %p185, %p186
      %p188 = scmp.ne.s32.totalorder %s180, %s183
      %p189 = scmp.eq.s32.totalorder %s28, 0
      %p190 = por %p188, %p189
      %p191 = scmp.ne.s32.totalorder %s180, %s183
      %p192 = scmp.eq.s32.totalorder %s33, 3
      %p193 = por %p191, %p192
      %p194 = scmp.ne.s32.totalorder %s183, %s184
      %p195 = scmp.eq.s32.totalorder %s33, 0
      %p196 = por %p194, %p195
      %p197 = scmp.ne.s32.totalorder %s183, %s184
      %p198 = scmp.eq.s32.totalorder %s34, 3
      %p199 = por %p197, %p198
      %p201 = scmp.ne.s32.totalorder %s184, %s200
      %p202 = scmp.eq.s32.totalorder %s34, 0
      %p203 = por %p201, %p202
      %s204 = ssub.s32 %s36, %s43
      %p205 = scmp.eq.s32.totalorder %s204, 0
      %s207 = sadd.s32 %s206, 1
      %s208 = scalar_select %p205, %s206, %s207
      %p211 = pneg %p205
      %p212 = scmp.eq.s32.totalorder %s28, 3
      %p213 = por %p211, %p212
      %p214 = scmp.ne.s32.totalorder %s206, %s209
      %p215 = scmp.eq.s32.totalorder %s28, 0
      %p216 = por %p214, %p215
      %p217 = scmp.ne.s32.totalorder %s206, %s209
      %p218 = scmp.eq.s32.totalorder %s33, 3
      %p219 = por %p217, %p218
      %p220 = scmp.ne.s32.totalorder %s209, %s210
      %p221 = scmp.eq.s32.totalorder %s33, 0
      %p222 = por %p220, %p221
      %p223 = scmp.ne.s32.totalorder %s209, %s210
      %p224 = scmp.eq.s32.totalorder %s34, 3
      %p225 = por %p223, %p224
      %p227 = scmp.ne.s32.totalorder %s210, %s226
      %p228 = scmp.eq.s32.totalorder %s34, 0
      %p229 = por %p227, %p228
      %s230 = ssub.s32 %s36, %s43
      %p231 = scmp.eq.s32.totalorder %s230, 0
      %s233 = sadd.s32 %s232, 1
      %s234 = scalar_select %p231, %s232, %s233
      %p237 = pneg %p231
      %p238 = scmp.eq.s32.totalorder %s28, 3
      %p239 = por %p237, %p238
      %p240 = scmp.ne.s32.totalorder %s232, %s235
      %p241 = scmp.eq.s32.totalorder %s28, 0
      %p242 = por %p240, %p241
      %p243 = scmp.ne.s32.totalorder %s232, %s235
      %p244 = scmp.eq.s32.totalorder %s33, 3
      %p245 = por %p243, %p244
      %p246 = scmp.ne.s32.totalorder %s235, %s236
      %p247 = scmp.eq.s32.totalorder %s33, 0
      %p248 = por %p246, %p247
      %p249 = scmp.ne.s32.totalorder %s235, %s236
      %p250 = scmp.eq.s32.totalorder %s34, 3
      %p251 = por %p249, %p250
      %p253 = scmp.ne.s32.totalorder %s236, %s252
      %p254 = scmp.eq.s32.totalorder %s34, 0
      %p255 = por %p253, %p254
      %s256 = ssub.s32 %s36, %s43
      %p257 = scmp.eq.s32.totalorder %s256, 0
      %s259 = sadd.s32 %s258, 1
      %s260 = scalar_select %p257, %s258, %s259
      %p263 = pneg %p257
      %p264 = scmp.eq.s32.totalorder %s28, 3
      %p265 = por %p263, %p264
      %p266 = scmp.ne.s32.totalorder %s258, %s261
      %p267 = scmp.eq.s32.totalorder %s28, 0
      %p268 = por %p266, %p267
      %p269 = scmp.ne.s32.totalorder %s258, %s261
      %p270 = scmp.eq.s32.totalorder %s33, 3
      %p271 = por %p269, %p270
      %p272 = scmp.ne.s32.totalorder %s261, %s262
      %p273 = scmp.eq.s32.totalorder %s33, 0
      %p274 = por %p272, %p273
      %p275 = scmp.ne.s32.totalorder %s261, %s262
      %p276 = scmp.eq.s32.totalorder %s34, 3
      %p277 = por %p275, %p276
      %p279 = scmp.ne.s32.totalorder %s262, %s278
      %p280 = scmp.eq.s32.totalorder %s34, 0
      %p281 = por %p279, %p280
      %s282 = ssub.s32 %s36, %s43
      %p283 = scmp.eq.s32.totalorder %s282, 0
      %s285 = sadd.s32 %s284, 1
      %s286 = scalar_select %p283, %s284, %s285
      %p289 = pneg %p283
      %p290 = scmp.eq.s32.totalorder %s28, 3
      %p291 = por %p289, %p290
      %p292 = scmp.ne.s32.totalorder %s284, %s287
      %p293 = scmp.eq.s32.totalorder %s28, 0
      %p294 = por %p292, %p293
      %p295 = scmp.ne.s32.totalorder %s284, %s287
      %p296 = scmp.eq.s32.totalorder %s33, 3
      %p297 = por %p295, %p296
      %p298 = scmp.ne.s32.totalorder %s287, %s288
      %p299 = scmp.eq.s32.totalorder %s33, 0
      %p300 = por %p298, %p299
      %p301 = scmp.ne.s32.totalorder %s287, %s288
      %p302 = scmp.eq.s32.totalorder %s34, 3
      %p303 = por %p301, %p302
      %p305 = scmp.ne.s32.totalorder %s288, %s304
      %p306 = scmp.eq.s32.totalorder %s34, 0
      %p307 = por %p305, %p306
      %s308 = ssub.s32 %s35, %s47
      %p309 = scmp.eq.s32.totalorder %s308, 0
      %s311 = sadd.s32 %s310, 1
      %s312 = scalar_select %p309, %s310, %s311
      %p315 = pneg %p309
      %p316 = scmp.eq.s32.totalorder %s28, 3
      %p317 = por %p315, %p316
      %p318 = scmp.ne.s32.totalorder %s310, %s313
      %p319 = scmp.eq.s32.totalorder %s28, 0
      %p320 = por %p318, %p319
      %p321 = scmp.ne.s32.totalorder %s310, %s313
      %p322 = scmp.eq.s32.totalorder %s33, 3
      %p323 = por %p321, %p322
      %p324 = scmp.ne.s32.totalorder %s313, %s314
      %p325 = scmp.eq.s32.totalorder %s33, 0
      %p326 = por %p324, %p325
      %p327 = scmp.ne.s32.totalorder %s313, %s314
      %p328 = scmp.eq.s32.totalorder %s34, 3
      %p329 = por %p327, %p328
      %p331 = scmp.ne.s32.totalorder %s314, %s330
      %p332 = scmp.eq.s32.totalorder %s34, 0
      %p333 = por %p331, %p332
      %p334 = scmp.le.s32.totalorder 1, %s28
      %p335 = scmp.lt.s32.totalorder %s28, 5
      %p336 = pnand %p334, %p335
      %p337 = pneg %p336
      // Predicated region
      $region9: #{tpu_custom_call.1} parent=5 // pred_check
        _
      $region10: #{tpu_custom_call.1} parent=5 // pred_check_branch
        %339 = sbr.rel (%p336) target = $region12
      $region11: #{tpu_custom_call.1} parent=5 // pred_region
        %s340 = ssub.s32 %s28, 1
      $region12: #{tpu_custom_call.1} parent=5 // pred_fallthru
        _
      %p341 = scmp.lt.s32.totalorder %s28, 4
      // Predicated region
      $region13: #{tpu_custom_call.1} parent=5 // pred_check
        %p342 = pneg %p341
      $region14: #{tpu_custom_call.1} parent=5 // pred_check_branch
        %344 = sbr.rel (%p342) target = $region16
      $region15: #{tpu_custom_call.1} parent=5 // pred_region
        // Predicated region
        $region17: #{tpu_custom_call.1} parent=15 // pred_check
          %p345 = pneg %p60
        $region18: #{tpu_custom_call.1} parent=15 // pred_check_branch
          %347 = sbr.rel (%p345) target = $region20
        $region19: #{tpu_custom_call.1} parent=15 // pred_region
          %s348 = sand.u32 %s50, 1
          %s349 = scalar_lea.sflag [#allocation4], %s348
          %s350 = sand.u32 %s50, 1
          %s351 = smul.addr %s350, 8
          %s352 = scalar_lea.vmem [#allocation3], %s351
          %s354 = ssub.s32 128, 128
          %355 = vsyncadd %s349, %s354
          %s356 = smul.addr %s35, 128
          %s357 = scalar_lea.hbm %s0, %s356
          %s359 = sshll.u32 %s352, 4
          %s360 = int_to_ptr.vmem [resolvable:$true] %s359
          %362 = dma.hbm_to_vmem [thread:$0]  %s357, 128, %s360, %s349
        $region20: #{tpu_custom_call.1} parent=15 // pred_fallthru
          _
        // Predicated region
        $region21: #{tpu_custom_call.1} parent=15 // pred_check
          %p363 = pneg %p86
        $region22: #{tpu_custom_call.1} parent=15 // pred_check_branch
          %365 = sbr.rel (%p363) target = $region24
        $region23: #{tpu_custom_call.1} parent=15 // pred_region
          %s366 = sand.u32 %s28, 1
          %s367 = scalar_lea.sflag [#allocation7], %s366
          %s368 = sand.u32 %s76, 1
          %s369 = smul.addr %s368, 8
          %s370 = scalar_lea.vmem [#allocation6], %s369
          %s372 = ssub.s32 128, 128
          %373 = vsyncadd %s367, %s372
          %s374 = smul.addr %s35, 128
          %s375 = scalar_lea.hbm %s1, %s374
          %s377 = sshll.u32 %s370, 4
          %s378 = int_to_ptr.vmem [resolvable:$true] %s377
          %380 = dma.hbm_to_vmem [thread:$0]  %s375, 128, %s378, %s367
        $region24: #{tpu_custom_call.1} parent=15 // pred_fallthru
          _
        // Predicated region
        $region25: #{tpu_custom_call.1} parent=15 // pred_check
          %p381 = pneg %p112
        $region26: #{tpu_custom_call.1} parent=15 // pred_check_branch
          %383 = sbr.rel (%p381) target = $region28
        $region27: #{tpu_custom_call.1} parent=15 // pred_region
          %p384 = scmp.lt.s32.totalorder %s36, 1
          %s385 = scalar_select %p384, %s36, 1
          %s386 = smul.addr %s385, 4
          %s387 = smul.addr %s386, 8
          %s388 = scalar_lea.vmem %s2, %s387
        $region28: #{tpu_custom_call.1} parent=15 // pred_fallthru
          _
        // Predicated region
        $region29: #{tpu_custom_call.1} parent=15 // pred_check
          %p389 = pneg %p138
        $region30: #{tpu_custom_call.1} parent=15 // pred_check_branch
          %391 = sbr.rel (%p389) target = $region32
        $region31: #{tpu_custom_call.1} parent=15 // pred_region
          %p392 = scmp.lt.s32.totalorder %s36, 1
          %s393 = scalar_select %p392, %s36, 1
          %s394 = smul.addr %s393, 4
          %s395 = smul.addr %s394, 8
          %s396 = scalar_lea.vmem %s3, %s395
        $region32: #{tpu_custom_call.1} parent=15 // pred_fallthru
          _
        // Predicated region
        $region33: #{tpu_custom_call.1} parent=15 // pred_check
          %p397 = pneg %p164
        $region34: #{tpu_custom_call.1} parent=15 // pred_check_branch
          %399 = sbr.rel (%p397) target = $region36
        $region35: #{tpu_custom_call.1} parent=15 // pred_region
          %p400 = scmp.lt.s32.totalorder %s36, 1
          %s401 = scalar_select %p400, %s36, 1
          %s402 = smul.addr %s401, 4
          %s403 = smul.addr %s402, 8
          %s404 = scalar_lea.vmem %s4, %s403
        $region36: #{tpu_custom_call.1} parent=15 // pred_fallthru
          _
        // Predicated region
        $region37: #{tpu_custom_call.1} parent=15 // pred_check
          %p405 = pneg %p190
        $region38: #{tpu_custom_call.1} parent=15 // pred_check_branch
          %407 = sbr.rel (%p405) target = $region40
        $region39: #{tpu_custom_call.1} parent=15 // pred_region
          %s408 = sand.u32 %s28, 1
          %s409 = scalar_lea.sflag [#allocation7], %s408
          %s410 = sand.u32 %s180, 1
          %s411 = smul.addr %s410, 32
          %s412 = scalar_lea.vmem [#allocation8], %s411
          %s414 = ssub.s32 512, 512
          %415 = vsyncadd %s409, %s414
          %s416 = smul.addr %s36, 4
          %s417 = smul.addr %s416, 128
          %s418 = scalar_lea.hbm %s5, %s417
          %s419 = sshll.u32 %s412, 4
          %s420 = int_to_ptr.vmem [resolvable:$true] %s419
          %425 = dma.hbm_to_vmem [thread:$0]  %s418, 512, %s420, %s409, 128, 128, 8
        $region40: #{tpu_custom_call.1} parent=15 // pred_fallthru
          _
        // Predicated region
        $region41: #{tpu_custom_call.1} parent=15 // pred_check
          %p426 = pneg %p216
        $region42: #{tpu_custom_call.1} parent=15 // pred_check_branch
          %428 = sbr.rel (%p426) target = $region44
        $region43: #{tpu_custom_call.1} parent=15 // pred_region
          %s429 = sand.u32 %s28, 1
          %s430 = scalar_lea.sflag [#allocation10], %s429
          %s431 = sand.u32 %s206, 1
          %s432 = smul.addr %s431, 32
          %s433 = scalar_lea.vmem [#allocation9], %s432
          %s435 = ssub.s32 512, 512
          %436 = vsyncadd %s430, %s435
          %s437 = smul.addr %s36, 4
          %s438 = smul.addr %s437, 128
          %s439 = scalar_lea.hbm %s6, %s438
          %s440 = sshll.u32 %s433, 4
          %s441 = int_to_ptr.vmem [resolvable:$true] %s440
          %446 = dma.hbm_to_vmem [thread:$0]  %s439, 512, %s441, %s430, 128, 128, 8
        $region44: #{tpu_custom_call.1} parent=15 // pred_fallthru
          _
        // Predicated region
        $region45: #{tpu_custom_call.1} parent=15 // pred_check
          %p447 = pneg %p242
        $region46: #{tpu_custom_call.1} parent=15 // pred_check_branch
          %449 = sbr.rel (%p447) target = $region48
        $region47: #{tpu_custom_call.1} parent=15 // pred_region
          %p450 = scmp.lt.s32.totalorder %s36, 1
          %s451 = scalar_select %p450, %s36, 1
          %s452 = smul.addr %s451, 8
          %s453 = smul.addr %s452, 8
          %s454 = scalar_lea.vmem %s7, %s453
        $region48: #{tpu_custom_call.1} parent=15 // pred_fallthru
          _
        // Predicated region
        $region49: #{tpu_custom_call.1} parent=15 // pred_check
          %p455 = pneg %p268
        $region50: #{tpu_custom_call.1} parent=15 // pred_check_branch
          %457 = sbr.rel (%p455) target = $region52
        $region51: #{tpu_custom_call.1} parent=15 // pred_region
          %s458 = sand.u32 %s28, 1
          %s459 = scalar_lea.sflag [#allocation10], %s458
          %s460 = sand.u32 %s258, 1
          %s461 = smul.addr %s460, 8
          %s462 = scalar_lea.vmem [#allocation11], %s461
          %s464 = ssub.s32 128, 128
          %465 = vsyncadd %s459, %s464
          %s466 = smul.addr %s36, 128
          %s467 = scalar_lea.hbm %s8, %s466
          %s469 = sshll.u32 %s462, 4
          %s470 = int_to_ptr.vmem [resolvable:$true] %s469
          %472 = dma.hbm_to_vmem [thread:$0]  %s467, 128, %s470, %s459
        $region52: #{tpu_custom_call.1} parent=15 // pred_fallthru
          _
        // Predicated region
        $region53: #{tpu_custom_call.1} parent=15 // pred_check
          %p473 = pneg %p294
        $region54: #{tpu_custom_call.1} parent=15 // pred_check_branch
          %475 = sbr.rel (%p473) target = $region56
        $region55: #{tpu_custom_call.1} parent=15 // pred_region
          %p476 = scmp.lt.s32.totalorder %s36, 1
          %s477 = scalar_select %p476, %s36, 1
          %s478 = scalar_lea.vmem %s9, %s477
        $region56: #{tpu_custom_call.1} parent=15 // pred_fallthru
          _
      $region16: #{tpu_custom_call.1} parent=5 // pred_fallthru
        _
      %p479 = scmp.le.s32.totalorder 1, %s28
      %p480 = scmp.lt.s32.totalorder %s28, 5
      %p481 = pnand %p479, %p480
      %p482 = pneg %p481
      // Predicated region
      $region57: #{tpu_custom_call.1} parent=5 // pred_check
        _
      $region58: #{tpu_custom_call.1} parent=5 // pred_check_branch
        %484 = sbr.rel (%p481) target = $region60
      $region59: #{tpu_custom_call.1} parent=5 // pred_region
        %s485 = ssub.s32 %s28, 1
        %s486 = sand.u32 %s53, 1
        %s487 = scalar_lea.sflag [#allocation4], %s486
        %s488 = sand.u32 %s53, 1
        %s489 = smul.addr %s488, 8
        %s490 = scalar_lea.vmem [#allocation3], %s489
        // Predicated region
        $region61: #{tpu_custom_call.1} parent=59 // pred_check
          %p491 = pneg %p66
        $region62: #{tpu_custom_call.1} parent=59 // pred_check_branch
          %493 = sbr.rel (%p491) target = $region64
        $region63: #{tpu_custom_call.1} parent=59 // pred_region
          %494 = dma.done %s487, 128
        $region64: #{tpu_custom_call.1} parent=59 // pred_fallthru
          _
        %s495 = sand.u32 %s33, 1
        %s496 = scalar_lea.sflag [#allocation7], %s495
        %s497 = sand.u32 %s79, 1
        %s498 = smul.addr %s497, 8
        %s499 = scalar_lea.vmem [#allocation6], %s498
        // Predicated region
        $region65: #{tpu_custom_call.1} parent=59 // pred_check
          %p500 = pneg %p92
        $region66: #{tpu_custom_call.1} parent=59 // pred_check_branch
          %502 = sbr.rel (%p500) target = $region68
        $region67: #{tpu_custom_call.1} parent=59 // pred_region
          %503 = dma.done %s496, 128
        $region68: #{tpu_custom_call.1} parent=59 // pred_fallthru
          _
        %s504 = sand.u32 %s33, 1
        %s505 = scalar_lea.sflag [#allocation7], %s504
        %s506 = sand.u32 %s183, 1
        %s507 = smul.addr %s506, 32
        %s508 = scalar_lea.vmem [#allocation8], %s507
        // Predicated region
        $region69: #{tpu_custom_call.1} parent=59 // pred_check
          %p509 = pneg %p196
        $region70: #{tpu_custom_call.1} parent=59 // pred_check_branch
          %511 = sbr.rel (%p509) target = $region72
        $region71: #{tpu_custom_call.1} parent=59 // pred_region
          %512 = dma.done %s505, 512
        $region72: #{tpu_custom_call.1} parent=59 // pred_fallthru
          _
        %s513 = sand.u32 %s33, 1
        %s514 = scalar_lea.sflag [#allocation10], %s513
        %s515 = sand.u32 %s209, 1
        %s516 = smul.addr %s515, 32
        %s517 = scalar_lea.vmem [#allocation9], %s516
        // Predicated region
        $region73: #{tpu_custom_call.1} parent=59 // pred_check
          %p518 = pneg %p222
        $region74: #{tpu_custom_call.1} parent=59 // pred_check_branch
          %520 = sbr.rel (%p518) target = $region76
        $region75: #{tpu_custom_call.1} parent=59 // pred_region
          %521 = dma.done %s514, 512
        $region76: #{tpu_custom_call.1} parent=59 // pred_fallthru
          _
        %s522 = sand.u32 %s33, 1
        %s523 = scalar_lea.sflag [#allocation10], %s522
        %s524 = sand.u32 %s261, 1
        %s525 = smul.addr %s524, 8
        %s526 = scalar_lea.vmem [#allocation11], %s525
        // Predicated region
        $region77: #{tpu_custom_call.1} parent=59 // pred_check
          %p527 = pneg %p274
        $region78: #{tpu_custom_call.1} parent=59 // pred_check_branch
          %529 = sbr.rel (%p527) target = $region80
        $region79: #{tpu_custom_call.1} parent=59 // pred_region
          %530 = dma.done %s523, 128
        $region80: #{tpu_custom_call.1} parent=59 // pred_fallthru
          _
        %s531 = sand.u32 %s53, 1
        %s532 = scalar_lea.sflag [#allocation4], %s531
        %s533 = sand.u32 %s53, 1
        %s534 = smul.addr %s533, 8
        %s535 = scalar_lea.vmem [#allocation3], %s534
        %p536 = pneg %p66
        %p537 = pneg %p63
        %s538 = sand.u32 %s33, 1
        %s539 = scalar_lea.sflag [#allocation7], %s538
        %s540 = sand.u32 %s79, 1
        %s541 = smul.addr %s540, 8
        %s542 = scalar_lea.vmem [#allocation6], %s541
        %p543 = pneg %p92
        %p544 = pneg %p89
        %p545 = scmp.lt.s32.totalorder %s38, 1
        %s546 = scalar_select %p545, %s38, 1
        %s547 = smul.addr %s546, 4
        %s548 = smul.addr %s547, 8
        %s549 = scalar_lea.vmem %s2, %s548
        %p550 = pneg %p118
        %p551 = pneg %p115
        %p552 = scmp.lt.s32.totalorder %s38, 1
        %s553 = scalar_select %p552, %s38, 1
        %s554 = smul.addr %s553, 4
        %s555 = smul.addr %s554, 8
        %s556 = scalar_lea.vmem %s3, %s555
        %p557 = pneg %p144
        %p558 = pneg %p141
        %p559 = scmp.lt.s32.totalorder %s38, 1
        %s560 = scalar_select %p559, %s38, 1
        %s561 = smul.addr %s560, 4
        %s562 = smul.addr %s561, 8
        %s563 = scalar_lea.vmem %s4, %s562
        %p564 = pneg %p170
        %p565 = pneg %p167
        %s566 = sand.u32 %s33, 1
        %s567 = scalar_lea.sflag [#allocation7], %s566
        %s568 = sand.u32 %s183, 1
        %s569 = smul.addr %s568, 32
        %s570 = scalar_lea.vmem [#allocation8], %s569
        %p571 = pneg %p196
        %p572 = pneg %p193
        %s573 = sand.u32 %s33, 1
        %s574 = scalar_lea.sflag [#allocation10], %s573
        %s575 = sand.u32 %s209, 1
        %s576 = smul.addr %s575, 32
        %s577 = scalar_lea.vmem [#allocation9], %s576
        %p578 = pneg %p222
        %p579 = pneg %p219
        %p580 = scmp.lt.s32.totalorder %s38, 1
        %s581 = scalar_select %p580, %s38, 1
        %s582 = smul.addr %s581, 8
        %s583 = smul.addr %s582, 8
        %s584 = scalar_lea.vmem %s7, %s583
        %p585 = pneg %p248
        %p586 = pneg %p245
        %s587 = sand.u32 %s33, 1
        %s588 = scalar_lea.sflag [#allocation10], %s587
        %s589 = sand.u32 %s261, 1
        %s590 = smul.addr %s589, 8
        %s591 = scalar_lea.vmem [#allocation11], %s590
        %p592 = pneg %p274
        %p593 = pneg %p271
        %p594 = scmp.lt.s32.totalorder %s38, 1
        %s595 = scalar_select %p594, %s38, 1
        %s596 = scalar_lea.vmem %s9, %s595
        %p597 = pneg %p300
        %p598 = pneg %p297
        %p599 = pneg %p326
        %p600 = pneg %p323
        %s601 = sand.u32 %s313, 1
        %s602 = scalar_lea.sflag [#allocation5], %s601
        %s603 = sand.u32 %s313, 1
        %s604 = smul.addr %s603, 8
        %s605 = scalar_lea.vmem [#allocation12], %s604
        %p606 = scmp.lt.s32.totalorder %s38, 1
        %s607 = scalar_select %p606, %s38, 1
        %s608 = smul.addr %s607, 4
        %s609 = smul.addr %s608, 8
        %s610 = scalar_lea.vmem %s2, %s609
        %p611 = scmp.lt.s32.totalorder %s38, 1
        %s612 = scalar_select %p611, %s38, 1
        %s613 = smul.addr %s612, 4
        %s614 = smul.addr %s613, 8
        %s615 = scalar_lea.vmem %s3, %s614
        %p616 = scmp.lt.s32.totalorder %s38, 1
        %s617 = scalar_select %p616, %s38, 1
        %s618 = smul.addr %s617, 4
        %s619 = smul.addr %s618, 8
        %s620 = scalar_lea.vmem %s4, %s619
        %p621 = scmp.lt.s32.totalorder %s38, 1
        %s622 = scalar_select %p621, %s38, 1
        %s623 = smul.addr %s622, 8
        %s624 = smul.addr %s623, 8
        %s625 = scalar_lea.vmem %s7, %s624
        %p626 = scmp.lt.s32.totalorder %s38, 1
        %s627 = scalar_select %p626, %s38, 1
        %s628 = scalar_lea.vmem %s9, %s627
        %p629 = scmp.eq.s32.totalorder %s38, 0
        // Predicated region
        $region81: #{tpu_custom_call.1} parent=59 // pred_check
          %p630 = pneg %p629
        $region82: #{tpu_custom_call.1} parent=59 // pred_check_branch
          %632 = sbr.rel (%p630) target = $region84
        $region83: #{tpu_custom_call.1} parent=59 // pred_region
          %v633 = vld [vmem:[%s490] sm:$0xff]
          %vm634 = vcmask 261120
          %635 = vst.msk [vmem:[#allocation2] sm:$0xff] %vm634, %v633
        $region84: #{tpu_custom_call.1} parent=59 // pred_fallthru
          _
        %v636 = vld [vmem:[#allocation2] sm:$0xff]
        %v637 = vld [vmem:[%s499] sm:$0xff]
        %v638 = vadd.f32 %v636, %v637
        %v639 = vld [vmem:[%s526] sm:$0xff]
        %v640 = vld [vmem:[%s628] sm:$0x1]
        %v641 = vld [vmem:[%s610] sm:$0xff]
        %v642 = vld [vmem:[%s610 + $0x8] sm:$0xff]
        %v643 = vld [vmem:[%s610 + $0x10] sm:$0xff]
        %v644 = vld [vmem:[%s610 + $0x18] sm:$0xff]
        %vm645 = vcmask 261120
        %v647 = vsel %vm645, %v638, 0
        %649 = vmatprep.subr.mxu0 0.0
        %650 = vmatpush1.msra.mxu0 0.0
        %651 = vmatprep.subr.mxu0 0.0
        %652 = vmatpush1.msra.mxu0 0.0
        %653 = vmatprep.subr.mxu0 0.0
        %654 = vmatpush1.msra.mxu0 0.0
        %655 = vmatprep.subr.mxu0 0.0
        %656 = vmatpush1.msra.mxu0 0.0
        %657 = vmatprep.subr.mxu0 0.0
        %658 = vmatpush1.msra.mxu0 0.0
        %659 = vmatprep.subr.mxu0 0.0
        %660 = vmatpush1.msra.mxu0 0.0
        %661 = vmatprep.subr.mxu0 0.0
        %662 = vmatpush1.msra.mxu0 0.0
        %663 = vmatprep.subr.mxu0 0.0
        %664 = vmatpush1.msra.mxu0 0.0
        %665 = vmatprep.subr.mxu0 0.0
        %666 = vmatpush1.msra.mxu0 0.0
        %667 = vmatprep.subr.mxu0 0.0
        %668 = vmatpush1.msra.mxu0 0.0
        %669 = vmatprep.subr.mxu0 0.0
        %670 = vmatpush1.msra.mxu0 0.0
        %671 = vmatprep.subr.mxu0 0.0
        %672 = vmatpush1.msra.mxu0 0.0
        %673 = vmatprep.subr.mxu0 0.0
        %674 = vmatpush1.msra.mxu0 %v644
        %675 = vmatprep.subr.mxu0 0.0
        %676 = vmatpush1.msra.mxu0 %v643
        %677 = vmatprep.subr.mxu0 0.0
        %678 = vmatpush1.msra.mxu0 %v642
        %679 = vmatprep.subr.mxu0 0.0
        %680 = vmatpush1.msra.mxu0 %v641
        %681 = vmatprep.subr.mxu0 0.0
        %682 = vmatpush2.msra.mxu0 0.0
        %683 = vmatprep.subr.mxu0 0.0
        %684 = vmatpush2.msra.mxu0 0.0
        %685 = vmatprep.subr.mxu0 0.0
        %686 = vmatpush2.msra.mxu0 0.0
        %687 = vmatprep.subr.mxu0 0.0
        %688 = vmatpush2.msra.mxu0 0.0
        %689 = vmatprep.subr.mxu0 0.0
        %690 = vmatpush2.msra.mxu0 0.0
        %691 = vmatprep.subr.mxu0 0.0
        %692 = vmatpush2.msra.mxu0 0.0
        %693 = vmatprep.subr.mxu0 0.0
        %694 = vmatpush2.msra.mxu0 0.0
        %695 = vmatprep.subr.mxu0 0.0
        %696 = vmatpush2.msra.mxu0 0.0
        %697 = vmatprep.subr.mxu0 0.0
        %698 = vmatpush2.msra.mxu0 0.0
        %699 = vmatprep.subr.mxu0 0.0
        %700 = vmatpush2.msra.mxu0 0.0
        %701 = vmatprep.subr.mxu0 0.0
        %702 = vmatpush2.msra.mxu0 0.0
        %703 = vmatprep.subr.mxu0 0.0
        %704 = vmatpush2.msra.mxu0 0.0
        %705 = vmatprep.subr.mxu0 0.0
        %706 = vmatpush2.msra.mxu0 0.0
        %707 = vmatprep.subr.mxu0 0.0
        %708 = vmatpush2.msra.mxu0 0.0
        %709 = vmatprep.subr.mxu0 0.0
        %710 = vmatpush2.msra.mxu0 0.0
        %711 = vmatprep.subr.mxu0 0.0
        %712 = vmatpush2.msra.mxu0 0.0
        %713 = vmatprep.mubr.f32.mxu0 0.0
        %714 = vmatmul.mubr.f32.gmra.mxu0 %v647
        %v715 = vpop.f32.mrf.mxu0
        %v716 = vadd.f32 0.0, %v715
        %v717 = vpop.f32.mrf.mxu0
        %718 = vdwg.mxu0
        %v719 = vld [vmem:[%s615] sm:$0xff]
        %v720 = vld [vmem:[%s615 + $0x8] sm:$0xff]
        %v721 = vld [vmem:[%s615 + $0x10] sm:$0xff]
        %v722 = vld [vmem:[%s615 + $0x18] sm:$0xff]
        %723 = vmatprep.subr.mxu0 0.0
        %724 = vmatpush1.msra.mxu0 0.0
        %725 = vmatprep.subr.mxu0 0.0
        %726 = vmatpush1.msra.mxu0 0.0
        %727 = vmatprep.subr.mxu0 0.0
        %728 = vmatpush1.msra.mxu0 0.0
        %729 = vmatprep.subr.mxu0 0.0
        %730 = vmatpush1.msra.mxu0 0.0
        %731 = vmatprep.subr.mxu0 0.0
        %732 = vmatpush1.msra.mxu0 0.0
        %733 = vmatprep.subr.mxu0 0.0
        %734 = vmatpush1.msra.mxu0 0.0
        %735 = vmatprep.subr.mxu0 0.0
        %736 = vmatpush1.msra.mxu0 0.0
        %737 = vmatprep.subr.mxu0 0.0
        %738 = vmatpush1.msra.mxu0 0.0
        %739 = vmatprep.subr.mxu0 0.0
        %740 = vmatpush1.msra.mxu0 0.0
        %741 = vmatprep.subr.mxu0 0.0
        %742 = vmatpush1.msra.mxu0 0.0
        %743 = vmatprep.subr.mxu0 0.0
        %744 = vmatpush1.msra.mxu0 0.0
        %745 = vmatprep.subr.mxu0 0.0
        %746 = vmatpush1.msra.mxu0 0.0
        %747 = vmatprep.subr.mxu0 0.0
        %748 = vmatpush1.msra.mxu0 %v722
        %749 = vmatprep.subr.mxu0 0.0
        %750 = vmatpush1.msra.mxu0 %v721
        %751 = vmatprep.subr.mxu0 0.0
        %752 = vmatpush1.msra.mxu0 %v720
        %753 = vmatprep.subr.mxu0 0.0
        %754 = vmatpush1.msra.mxu0 %v719
        %755 = vmatprep.subr.mxu0 0.0
        %756 = vmatpush2.msra.mxu0 0.0
        %757 = vmatprep.subr.mxu0 0.0
        %758 = vmatpush2.msra.mxu0 0.0
        %759 = vmatprep.subr.mxu0 0.0
        %760 = vmatpush2.msra.mxu0 0.0
        %761 = vmatprep.subr.mxu0 0.0
        %762 = vmatpush2.msra.mxu0 0.0
        %763 = vmatprep.subr.mxu0 0.0
        %764 = vmatpush2.msra.mxu0 0.0
        %765 = vmatprep.subr.mxu0 0.0
        %766 = vmatpush2.msra.mxu0 0.0
        %767 = vmatprep.subr.mxu0 0.0
        %768 = vmatpush2.msra.mxu0 0.0
        %769 = vmatprep.subr.mxu0 0.0
        %770 = vmatpush2.msra.mxu0 0.0
        %771 = vmatprep.subr.mxu0 0.0
        %772 = vmatpush2.msra.mxu0 0.0
        %773 = vmatprep.subr.mxu0 0.0
        %774 = vmatpush2.msra.mxu0 0.0
        %775 = vmatprep.subr.mxu0 0.0
        %776 = vmatpush2.msra.mxu0 0.0
        %777 = vmatprep.subr.mxu0 0.0
        %778 = vmatpush2.msra.mxu0 0.0
        %779 = vmatprep.subr.mxu0 0.0
        %780 = vmatpush2.msra.mxu0 0.0
        %781 = vmatprep.subr.mxu0 0.0
        %782 = vmatpush2.msra.mxu0 0.0
        %783 = vmatprep.subr.mxu0 0.0
        %784 = vmatpush2.msra.mxu0 0.0
        %785 = vmatprep.subr.mxu0 0.0
        %786 = vmatpush2.msra.mxu0 0.0
        %787 = vmatprep.mubr.f32.mxu0 0.0
        %788 = vmatmul.mubr.f32.gmra.mxu0 %v647
        %v789 = vpop.f32.mrf.mxu0
        %v790 = vadd.f32 0.0, %v789
        %v791 = vpop.f32.mrf.mxu0
        %792 = vdwg.mxu0
        %v793 = vld [vmem:[%s620] sm:$0xff]
        %v794 = vld [vmem:[%s620 + $0x8] sm:$0xff]
        %v795 = vld [vmem:[%s620 + $0x10] sm:$0xff]
        %v796 = vld [vmem:[%s620 + $0x18] sm:$0xff]
        %v798 = vsel %vm645, %v636, 0
        %800 = vmatprep.subr.mxu0 0.0
        %801 = vmatpush1.msra.mxu0 0.0
        %802 = vmatprep.subr.mxu0 0.0
        %803 = vmatpush1.msra.mxu0 0.0
        %804 = vmatprep.subr.mxu0 0.0
        %805 = vmatpush1.msra.mxu0 0.0
        %806 = vmatprep.subr.mxu0 0.0
        %807 = vmatpush1.msra.mxu0 0.0
        %808 = vmatprep.subr.mxu0 0.0
        %809 = vmatpush1.msra.mxu0 0.0
        %810 = vmatprep.subr.mxu0 0.0
        %811 = vmatpush1.msra.mxu0 0.0
        %812 = vmatprep.subr.mxu0 0.0
        %813 = vmatpush1.msra.mxu0 0.0
        %814 = vmatprep.subr.mxu0 0.0
        %815 = vmatpush1.msra.mxu0 0.0
        %816 = vmatprep.subr.mxu0 0.0
        %817 = vmatpush1.msra.mxu0 0.0
        %818 = vmatprep.subr.mxu0 0.0
        %819 = vmatpush1.msra.mxu0 0.0
        %820 = vmatprep.subr.mxu0 0.0
        %821 = vmatpush1.msra.mxu0 0.0
        %822 = vmatprep.subr.mxu0 0.0
        %823 = vmatpush1.msra.mxu0 0.0
        %824 = vmatprep.subr.mxu0 0.0
        %825 = vmatpush1.msra.mxu0 %v796
        %826 = vmatprep.subr.mxu0 0.0
        %827 = vmatpush1.msra.mxu0 %v795
        %828 = vmatprep.subr.mxu0 0.0
        %829 = vmatpush1.msra.mxu0 %v794
        %830 = vmatprep.subr.mxu0 0.0
        %831 = vmatpush1.msra.mxu0 %v793
        %832 = vmatprep.subr.mxu0 0.0
        %833 = vmatpush2.msra.mxu0 0.0
        %834 = vmatprep.subr.mxu0 0.0
        %835 = vmatpush2.msra.mxu0 0.0
        %836 = vmatprep.subr.mxu0 0.0
        %837 = vmatpush2.msra.mxu0 0.0
        %838 = vmatprep.subr.mxu0 0.0
        %839 = vmatpush2.msra.mxu0 0.0
        %840 = vmatprep.subr.mxu0 0.0
        %841 = vmatpush2.msra.mxu0 0.0
        %842 = vmatprep.subr.mxu0 0.0
        %843 = vmatpush2.msra.mxu0 0.0
        %844 = vmatprep.subr.mxu0 0.0
        %845 = vmatpush2.msra.mxu0 0.0
        %846 = vmatprep.subr.mxu0 0.0
        %847 = vmatpush2.msra.mxu0 0.0
        %848 = vmatprep.subr.mxu0 0.0
        %849 = vmatpush2.msra.mxu0 0.0
        %850 = vmatprep.subr.mxu0 0.0
        %851 = vmatpush2.msra.mxu0 0.0
        %852 = vmatprep.subr.mxu0 0.0
        %853 = vmatpush2.msra.mxu0 0.0
        %854 = vmatprep.subr.mxu0 0.0
        %855 = vmatpush2.msra.mxu0 0.0
        %856 = vmatprep.subr.mxu0 0.0
        %857 = vmatpush2.msra.mxu0 0.0
        %858 = vmatprep.subr.mxu0 0.0
        %859 = vmatpush2.msra.mxu0 0.0
        %860 = vmatprep.subr.mxu0 0.0
        %861 = vmatpush2.msra.mxu0 0.0
        %862 = vmatprep.subr.mxu0 0.0
        %863 = vmatpush2.msra.mxu0 0.0
        %864 = vmatprep.mubr.f32.mxu0 0.0
        %865 = vmatmul.mubr.f32.gmra.mxu0 %v798
        %v866 = vpop.f32.mrf.mxu0
        %v867 = vadd.f32 0.0, %v866
        %v868 = vpop.f32.mrf.mxu0
        %869 = vdwg.mxu0
        %871 = vrot.lane.b32.xlu0 %v716, 120
        %v872 = vpop.permute.xlu0 %871
        %874 = vrot.lane.b32.xlu0 %v716, 112
        %v875 = vpop.permute.xlu0 %874
        %877 = vrot.lane.b32.xlu0 %v716, 104
        %v878 = vpop.permute.xlu0 %877
        %v880 = vcombine.low %v716, %v875
        %v881 = vcombine.high %v716, %v875
        %v883 = vunpack.c.l.s4 1983009808
        %v884 = vunpack.c.0.s8 %v883
        %v885 = vlaneseq
        %v886 = vshrl.u32 %v885, 7
        %v887 = vsub.s32 %v884, %v886
        %v888 = vrot.slane %v880, %v887
        %v890 = vunpack.c.l.s4 1983009808
        %v891 = vunpack.c.0.s8 %v890
        %v892 = vlaneseq
        %v893 = vshrl.u32 %v892, 7
        %v894 = vsub.s32 %v891, %v893
        %v895 = vrot.slane %v881, %v894
        %v896 = vcombine.low %v872, %v878
        %v897 = vcombine.high %v872, %v878
        %v899 = vunpack.c.l.s4 1983009808
        %v900 = vunpack.c.0.s8 %v899
        %v901 = vlaneseq
        %v902 = vshrl.u32 %v901, 7
        %v903 = vsub.s32 %v900, %v902
        %v904 = vrot.slane %v896, %v903
        %v906 = vunpack.c.l.s4 1983009808
        %v907 = vunpack.c.0.s8 %v906
        %v908 = vlaneseq
        %v909 = vshrl.u32 %v908, 7
        %v910 = vsub.s32 %v907, %v909
        %v911 = vrot.slane %v897, %v910
        %v912 = vcombine.low %v888, %v904
        %v913 = vcombine.high %v888, %v904
        %v915 = vunpack.c.l.s4 1934713408
        %v916 = vunpack.c.0.s8 %v915
        %v917 = vlaneseq
        %v918 = vshrl.u32 %v917, 7
        %v919 = vsub.s32 %v916, %v918
        %v920 = vrot.slane %v912, %v919
        %v922 = vunpack.c.l.s4 1934713408
        %v923 = vunpack.c.0.s8 %v922
        %v924 = vlaneseq
        %v925 = vshrl.u32 %v924, 7
        %v926 = vsub.s32 %v923, %v925
        %v927 = vrot.slane %v913, %v926
        %v928 = vcombine.low %v895, %v911
        %v929 = vcombine.high %v895, %v911
        %v931 = vunpack.c.l.s4 1934713408
        %v932 = vunpack.c.0.s8 %v931
        %v933 = vlaneseq
        %v934 = vshrl.u32 %v933, 7
        %v935 = vsub.s32 %v932, %v934
        %v936 = vrot.slane %v928, %v935
        %v938 = vunpack.c.l.s4 1934713408
        %v939 = vunpack.c.0.s8 %v938
        %v940 = vlaneseq
        %v941 = vshrl.u32 %v940, 7
        %v942 = vsub.s32 %v939, %v941
        %v943 = vrot.slane %v929, %v942
        %v944 = vcombine.high %v920, 0.0
        %v945 = vcombine.high %v927, 0.0
        %v946 = vcombine.high %v936, 0.0
        %v947 = vcombine.high %v943, 0.0
        %v948 = vcombine.low %v920, %v927
        %v950 = vunpack.c.l.s4 1983009808
        %v951 = vunpack.c.0.s8 %v950
        %v952 = vlaneseq
        %v953 = vshrl.u32 %v952, 7
        %v954 = vsub.s32 %v951, %v953
        %v955 = vrot.slane %v948, %v954
        %v956 = vcombine.low %v944, %v945
        %v958 = vunpack.c.l.s4 1983009808
        %v959 = vunpack.c.0.s8 %v958
        %v960 = vlaneseq
        %v961 = vshrl.u32 %v960, 7
        %v962 = vsub.s32 %v959, %v961
        %v963 = vrot.slane %v956, %v962
        %v964 = vcombine.low %v936, %v943
        %v966 = vunpack.c.l.s4 1983009808
        %v967 = vunpack.c.0.s8 %v966
        %v968 = vlaneseq
        %v969 = vshrl.u32 %v968, 7
        %v970 = vsub.s32 %v967, %v969
        %v971 = vrot.slane %v964, %v970
        %v972 = vcombine.low %v946, %v947
        %v974 = vunpack.c.l.s4 1983009808
        %v975 = vunpack.c.0.s8 %v974
        %v976 = vlaneseq
        %v977 = vshrl.u32 %v976, 7
        %v978 = vsub.s32 %v975, %v977
        %v979 = vrot.slane %v972, %v978
        %v980 = vcombine.low %v955, %v963
        %v981 = vcombine.high %v955, %v963
        %v983 = vunpack.c.l.s4 1934713408
        %v984 = vunpack.c.0.s8 %v983
        %v985 = vlaneseq
        %v986 = vshrl.u32 %v985, 7
        %v987 = vsub.s32 %v984, %v986
        %v988 = vrot.slane %v980, %v987
        %v990 = vunpack.c.l.s4 1934713408
        %v991 = vunpack.c.0.s8 %v990
        %v992 = vlaneseq
        %v993 = vshrl.u32 %v992, 7
        %v994 = vsub.s32 %v991, %v993
        %v995 = vrot.slane %v981, %v994
        %v996 = vcombine.low %v971, %v979
        %v997 = vcombine.high %v971, %v979
        %v999 = vunpack.c.l.s4 1934713408
        %v1000 = vunpack.c.0.s8 %v999
        %v1001 = vlaneseq
        %v1002 = vshrl.u32 %v1001, 7
        %v1003 = vsub.s32 %v1000, %v1002
        %v1004 = vrot.slane %v996, %v1003
        %v1006 = vunpack.c.l.s4 1934713408
        %v1007 = vunpack.c.0.s8 %v1006
        %v1008 = vlaneseq
        %v1009 = vshrl.u32 %v1008, 7
        %v1010 = vsub.s32 %v1007, %v1009
        %v1011 = vrot.slane %v997, %v1010
        %v1012 = vcombine.low %v988, %v1004
        %v1013 = vcombine.high %v988, %v1004
        %v1014 = vcombine.low %v995, %v1011
        %v1015 = vcombine.high %v995, %v1011
        %1017 = vrot.lane.b32.xlu0 %v790, 120
        %v1018 = vpop.permute.xlu0 %1017
        %1020 = vrot.lane.b32.xlu0 %v790, 112
        %v1021 = vpop.permute.xlu0 %1020
        %1023 = vrot.lane.b32.xlu0 %v790, 104
        %v1024 = vpop.permute.xlu0 %1023
        %v1026 = vcombine.low %v790, %v1021
        %v1027 = vcombine.high %v790, %v1021
        %v1029 = vunpack.c.l.s4 1983009808
        %v1030 = vunpack.c.0.s8 %v1029
        %v1031 = vlaneseq
        %v1032 = vshrl.u32 %v1031, 7
        %v1033 = vsub.s32 %v1030, %v1032
        %v1034 = vrot.slane %v1026, %v1033
        %v1036 = vunpack.c.l.s4 1983009808
        %v1037 = vunpack.c.0.s8 %v1036
        %v1038 = vlaneseq
        %v1039 = vshrl.u32 %v1038, 7
        %v1040 = vsub.s32 %v1037, %v1039
        %v1041 = vrot.slane %v1027, %v1040
        %v1042 = vcombine.low %v1018, %v1024
        %v1043 = vcombine.high %v1018, %v1024
        %v1045 = vunpack.c.l.s4 1983009808
        %v1046 = vunpack.c.0.s8 %v1045
        %v1047 = vlaneseq
        %v1048 = vshrl.u32 %v1047, 7
        %v1049 = vsub.s32 %v1046, %v1048
        %v1050 = vrot.slane %v1042, %v1049
        %v1052 = vunpack.c.l.s4 1983009808
        %v1053 = vunpack.c.0.s8 %v1052
        %v1054 = vlaneseq
        %v1055 = vshrl.u32 %v1054, 7
        %v1056 = vsub.s32 %v1053, %v1055
        %v1057 = vrot.slane %v1043, %v1056
        %v1058 = vcombine.low %v1034, %v1050
        %v1059 = vcombine.high %v1034, %v1050
        %v1061 = vunpack.c.l.s4 1934713408
        %v1062 = vunpack.c.0.s8 %v1061
        %v1063 = vlaneseq
        %v1064 = vshrl.u32 %v1063, 7
        %v1065 = vsub.s32 %v1062, %v1064
        %v1066 = vrot.slane %v1058, %v1065
        %v1068 = vunpack.c.l.s4 1934713408
        %v1069 = vunpack.c.0.s8 %v1068
        %v1070 = vlaneseq
        %v1071 = vshrl.u32 %v1070, 7
        %v1072 = vsub.s32 %v1069, %v1071
        %v1073 = vrot.slane %v1059, %v1072
        %v1074 = vcombine.low %v1041, %v1057
        %v1075 = vcombine.high %v1041, %v1057
        %v1077 = vunpack.c.l.s4 1934713408
        %v1078 = vunpack.c.0.s8 %v1077
        %v1079 = vlaneseq
        %v1080 = vshrl.u32 %v1079, 7
        %v1081 = vsub.s32 %v1078, %v1080
        %v1082 = vrot.slane %v1074, %v1081
        %v1084 = vunpack.c.l.s4 1934713408
        %v1085 = vunpack.c.0.s8 %v1084
        %v1086 = vlaneseq
        %v1087 = vshrl.u32 %v1086, 7
        %v1088 = vsub.s32 %v1085, %v1087
        %v1089 = vrot.slane %v1075, %v1088
        %v1090 = vcombine.high %v1066, 0.0
        %v1091 = vcombine.high %v1073, 0.0
        %v1092 = vcombine.high %v1082, 0.0
        %v1093 = vcombine.high %v1089, 0.0
        %v1094 = vcombine.low %v1066, %v1073
        %v1096 = vunpack.c.l.s4 1983009808
        %v1097 = vunpack.c.0.s8 %v1096
        %v1098 = vlaneseq
        %v1099 = vshrl.u32 %v1098, 7
        %v1100 = vsub.s32 %v1097, %v1099
        %v1101 = vrot.slane %v1094, %v1100
        %v1102 = vcombine.low %v1090, %v1091
        %v1104 = vunpack.c.l.s4 1983009808
        %v1105 = vunpack.c.0.s8 %v1104
        %v1106 = vlaneseq
        %v1107 = vshrl.u32 %v1106, 7
        %v1108 = vsub.s32 %v1105, %v1107
        %v1109 = vrot.slane %v1102, %v1108
        %v1110 = vcombine.low %v1082, %v1089
        %v1112 = vunpack.c.l.s4 1983009808
        %v1113 = vunpack.c.0.s8 %v1112
        %v1114 = vlaneseq
        %v1115 = vshrl.u32 %v1114, 7
        %v1116 = vsub.s32 %v1113, %v1115
        %v1117 = vrot.slane %v1110, %v1116
        %v1118 = vcombine.low %v1092, %v1093
        %v1120 = vunpack.c.l.s4 1983009808
        %v1121 = vunpack.c.0.s8 %v1120
        %v1122 = vlaneseq
        %v1123 = vshrl.u32 %v1122, 7
        %v1124 = vsub.s32 %v1121, %v1123
        %v1125 = vrot.slane %v1118, %v1124
        %v1126 = vcombine.low %v1101, %v1109
        %v1127 = vcombine.high %v1101, %v1109
        %v1129 = vunpack.c.l.s4 1934713408
        %v1130 = vunpack.c.0.s8 %v1129
        %v1131 = vlaneseq
        %v1132 = vshrl.u32 %v1131, 7
        %v1133 = vsub.s32 %v1130, %v1132
        %v1134 = vrot.slane %v1126, %v1133
        %v1136 = vunpack.c.l.s4 1934713408
        %v1137 = vunpack.c.0.s8 %v1136
        %v1138 = vlaneseq
        %v1139 = vshrl.u32 %v1138, 7
        %v1140 = vsub.s32 %v1137, %v1139
        %v1141 = vrot.slane %v1127, %v1140
        %v1142 = vcombine.low %v1117, %v1125
        %v1143 = vcombine.high %v1117, %v1125
        %v1145 = vunpack.c.l.s4 1934713408
        %v1146 = vunpack.c.0.s8 %v1145
        %v1147 = vlaneseq
        %v1148 = vshrl.u32 %v1147, 7
        %v1149 = vsub.s32 %v1146, %v1148
        %v1150 = vrot.slane %v1142, %v1149
        %v1152 = vunpack.c.l.s4 1934713408
        %v1153 = vunpack.c.0.s8 %v1152
        %v1154 = vlaneseq
        %v1155 = vshrl.u32 %v1154, 7
        %v1156 = vsub.s32 %v1153, %v1155
        %v1157 = vrot.slane %v1143, %v1156
        %v1158 = vcombine.low %v1134, %v1150
        %v1159 = vcombine.high %v1134, %v1150
        %v1160 = vcombine.low %v1141, %v1157
        %v1161 = vcombine.high %v1141, %v1157
        %1163 = vrot.lane.b32.xlu0 %v867, 120
        %v1164 = vpop.permute.xlu0 %1163
        %1166 = vrot.lane.b32.xlu0 %v867, 112
        %v1167 = vpop.permute.xlu0 %1166
        %1169 = vrot.lane.b32.xlu0 %v867, 104
        %v1170 = vpop.permute.xlu0 %1169
        %v1172 = vcombine.low %v867, %v1167
        %v1173 = vcombine.high %v867, %v1167
        %v1175 = vunpack.c.l.s4 1983009808
        %v1176 = vunpack.c.0.s8 %v1175
        %v1177 = vlaneseq
        %v1178 = vshrl.u32 %v1177, 7
        %v1179 = vsub.s32 %v1176, %v1178
        %v1180 = vrot.slane %v1172, %v1179
        %v1182 = vunpack.c.l.s4 1983009808
        %v1183 = vunpack.c.0.s8 %v1182
        %v1184 = vlaneseq
        %v1185 = vshrl.u32 %v1184, 7
        %v1186 = vsub.s32 %v1183, %v1185
        %v1187 = vrot.slane %v1173, %v1186
        %v1188 = vcombine.low %v1164, %v1170
        %v1189 = vcombine.high %v1164, %v1170
        %v1191 = vunpack.c.l.s4 1983009808
        %v1192 = vunpack.c.0.s8 %v1191
        %v1193 = vlaneseq
        %v1194 = vshrl.u32 %v1193, 7
        %v1195 = vsub.s32 %v1192, %v1194
        %v1196 = vrot.slane %v1188, %v1195
        %v1198 = vunpack.c.l.s4 1983009808
        %v1199 = vunpack.c.0.s8 %v1198
        %v1200 = vlaneseq
        %v1201 = vshrl.u32 %v1200, 7
        %v1202 = vsub.s32 %v1199, %v1201
        %v1203 = vrot.slane %v1189, %v1202
        %v1204 = vcombine.low %v1180, %v1196
        %v1205 = vcombine.high %v1180, %v1196
        %v1207 = vunpack.c.l.s4 1934713408
        %v1208 = vunpack.c.0.s8 %v1207
        %v1209 = vlaneseq
        %v1210 = vshrl.u32 %v1209, 7
        %v1211 = vsub.s32 %v1208, %v1210
        %v1212 = vrot.slane %v1204, %v1211
        %v1214 = vunpack.c.l.s4 1934713408
        %v1215 = vunpack.c.0.s8 %v1214
        %v1216 = vlaneseq
        %v1217 = vshrl.u32 %v1216, 7
        %v1218 = vsub.s32 %v1215, %v1217
        %v1219 = vrot.slane %v1205, %v1218
        %v1220 = vcombine.low %v1187, %v1203
        %v1221 = vcombine.high %v1187, %v1203
        %v1223 = vunpack.c.l.s4 1934713408
        %v1224 = vunpack.c.0.s8 %v1223
        %v1225 = vlaneseq
        %v1226 = vshrl.u32 %v1225, 7
        %v1227 = vsub.s32 %v1224, %v1226
        %v1228 = vrot.slane %v1220, %v1227
        %v1230 = vunpack.c.l.s4 1934713408
        %v1231 = vunpack.c.0.s8 %v1230
        %v1232 = vlaneseq
        %v1233 = vshrl.u32 %v1232, 7
        %v1234 = vsub.s32 %v1231, %v1233
        %v1235 = vrot.slane %v1221, %v1234
        %v1236 = vcombine.high %v1212, 0.0
        %v1237 = vcombine.high %v1219, 0.0
        %v1238 = vcombine.high %v1228, 0.0
        %v1239 = vcombine.high %v1235, 0.0
        %v1240 = vcombine.low %v1212, %v1219
        %v1242 = vunpack.c.l.s4 1983009808
        %v1243 = vunpack.c.0.s8 %v1242
        %v1244 = vlaneseq
        %v1245 = vshrl.u32 %v1244, 7
        %v1246 = vsub.s32 %v1243, %v1245
        %v1247 = vrot.slane %v1240, %v1246
        %v1248 = vcombine.low %v1236, %v1237
        %v1250 = vunpack.c.l.s4 1983009808
        %v1251 = vunpack.c.0.s8 %v1250
        %v1252 = vlaneseq
        %v1253 = vshrl.u32 %v1252, 7
        %v1254 = vsub.s32 %v1251, %v1253
        %v1255 = vrot.slane %v1248, %v1254
        %v1256 = vcombine.low %v1228, %v1235
        %v1258 = vunpack.c.l.s4 1983009808
        %v1259 = vunpack.c.0.s8 %v1258
        %v1260 = vlaneseq
        %v1261 = vshrl.u32 %v1260, 7
        %v1262 = vsub.s32 %v1259, %v1261
        %v1263 = vrot.slane %v1256, %v1262
        %v1264 = vcombine.low %v1238, %v1239
        %v1266 = vunpack.c.l.s4 1983009808
        %v1267 = vunpack.c.0.s8 %v1266
        %v1268 = vlaneseq
        %v1269 = vshrl.u32 %v1268, 7
        %v1270 = vsub.s32 %v1267, %v1269
        %v1271 = vrot.slane %v1264, %v1270
        %v1272 = vcombine.low %v1247, %v1255
        %v1273 = vcombine.high %v1247, %v1255
        %v1275 = vunpack.c.l.s4 1934713408
        %v1276 = vunpack.c.0.s8 %v1275
        %v1277 = vlaneseq
        %v1278 = vshrl.u32 %v1277, 7
        %v1279 = vsub.s32 %v1276, %v1278
        %v1280 = vrot.slane %v1272, %v1279
        %v1282 = vunpack.c.l.s4 1934713408
        %v1283 = vunpack.c.0.s8 %v1282
        %v1284 = vlaneseq
        %v1285 = vshrl.u32 %v1284, 7
        %v1286 = vsub.s32 %v1283, %v1285
        %v1287 = vrot.slane %v1273, %v1286
        %v1288 = vcombine.low %v1263, %v1271
        %v1289 = vcombine.high %v1263, %v1271
        %v1291 = vunpack.c.l.s4 1934713408
        %v1292 = vunpack.c.0.s8 %v1291
        %v1293 = vlaneseq
        %v1294 = vshrl.u32 %v1293, 7
        %v1295 = vsub.s32 %v1292, %v1294
        %v1296 = vrot.slane %v1288, %v1295
        %v1298 = vunpack.c.l.s4 1934713408
        %v1299 = vunpack.c.0.s8 %v1298
        %v1300 = vlaneseq
        %v1301 = vshrl.u32 %v1300, 7
        %v1302 = vsub.s32 %v1299, %v1301
        %v1303 = vrot.slane %v1289, %v1302
        %v1304 = vcombine.low %v1280, %v1296
        %v1305 = vcombine.high %v1280, %v1296
        %v1306 = vcombine.low %v1287, %v1303
        %v1307 = vcombine.high %v1287, %v1303
        %vm1308 = vcmask 64512
        %v1310 = vsel %vm1308, %v1012, 0
        %v1313 = vsel %vm1308, %v1158, 0
        %1315 = vmatprep.subr.mxu0 0.0
        %1316 = vmatpush1.xpose.msra.mxu0 0.0
        %1317 = vmatprep.subr.mxu0 0.0
        %1318 = vmatpush1.xpose.msra.mxu0 0.0
        %1319 = vmatprep.subr.mxu0 0.0
        %1320 = vmatpush1.xpose.msra.mxu0 0.0
        %1321 = vmatprep.subr.mxu0 0.0
        %1322 = vmatpush1.xpose.msra.mxu0 0.0
        %1323 = vmatprep.subr.mxu0 0.0
        %1324 = vmatpush1.xpose.msra.mxu0 0.0
        %1325 = vmatprep.subr.mxu0 0.0
        %1326 = vmatpush1.xpose.msra.mxu0 0.0
        %1327 = vmatprep.subr.mxu0 0.0
        %1328 = vmatpush1.xpose.msra.mxu0 0.0
        %1329 = vmatprep.subr.mxu0 0.0
        %1330 = vmatpush1.xpose.msra.mxu0 0.0
        %1331 = vmatprep.subr.mxu0 0.0
        %1332 = vmatpush1.xpose.msra.mxu0 0.0
        %1333 = vmatprep.subr.mxu0 0.0
        %1334 = vmatpush1.xpose.msra.mxu0 0.0
        %1335 = vmatprep.subr.mxu0 0.0
        %1336 = vmatpush1.xpose.msra.mxu0 0.0
        %1337 = vmatprep.subr.mxu0 0.0
        %1338 = vmatpush1.xpose.msra.mxu0 0.0
        %1339 = vmatprep.subr.mxu0 0.0
        %1340 = vmatpush1.xpose.msra.mxu0 0.0
        %1341 = vmatprep.subr.mxu0 0.0
        %1342 = vmatpush1.xpose.msra.mxu0 0.0
        %1343 = vmatprep.subr.mxu0 0.0
        %1344 = vmatpush1.xpose.msra.mxu0 0.0
        %1345 = vmatprep.subr.mxu0 0.0
        %1346 = vmatpush1.xpose.msra.mxu0 %v1313
        %1347 = vmatprep.subr.mxu0 0.0
        %1348 = vmatpush2.xpose.msra.mxu0 0.0
        %1349 = vmatprep.subr.mxu0 0.0
        %1350 = vmatpush2.xpose.msra.mxu0 0.0
        %1351 = vmatprep.subr.mxu0 0.0
        %1352 = vmatpush2.xpose.msra.mxu0 0.0
        %1353 = vmatprep.subr.mxu0 0.0
        %1354 = vmatpush2.xpose.msra.mxu0 0.0
        %1355 = vmatprep.subr.mxu0 0.0
        %1356 = vmatpush2.xpose.msra.mxu0 0.0
        %1357 = vmatprep.subr.mxu0 0.0
        %1358 = vmatpush2.xpose.msra.mxu0 0.0
        %1359 = vmatprep.subr.mxu0 0.0
        %1360 = vmatpush2.xpose.msra.mxu0 0.0
        %1361 = vmatprep.subr.mxu0 0.0
        %1362 = vmatpush2.xpose.msra.mxu0 0.0
        %1363 = vmatprep.subr.mxu0 0.0
        %1364 = vmatpush2.xpose.msra.mxu0 0.0
        %1365 = vmatprep.subr.mxu0 0.0
        %1366 = vmatpush2.xpose.msra.mxu0 0.0
        %1367 = vmatprep.subr.mxu0 0.0
        %1368 = vmatpush2.xpose.msra.mxu0 0.0
        %1369 = vmatprep.subr.mxu0 0.0
        %1370 = vmatpush2.xpose.msra.mxu0 0.0
        %1371 = vmatprep.subr.mxu0 0.0
        %1372 = vmatpush2.xpose.msra.mxu0 0.0
        %1373 = vmatprep.subr.mxu0 0.0
        %1374 = vmatpush2.xpose.msra.mxu0 0.0
        %1375 = vmatprep.subr.mxu0 0.0
        %1376 = vmatpush2.xpose.msra.mxu0 0.0
        %1377 = vmatprep.subr.mxu0 0.0
        %1378 = vmatpush2.xpose.msra.mxu0 0.0
        %1379 = vmatprep.mubr.f32.mxu0 0.0
        %1380 = vmatmul.mubr.f32.gmra.mxu0 %v1310
        %v1381 = vpop.f32.mrf.mxu0
        %v1382 = vadd.f32 0.0, %v1381
        %v1383 = vpop.f32.mrf.mxu0
        %1384 = vdwg.mxu0
        %v1386 = vsel %vm1308, %v1013, 0
        %v1389 = vsel %vm1308, %v1159, 0
        %1391 = vmatprep.subr.mxu0 0.0
        %1392 = vmatpush1.xpose.msra.mxu0 0.0
        %1393 = vmatprep.subr.mxu0 0.0
        %1394 = vmatpush1.xpose.msra.mxu0 0.0
        %1395 = vmatprep.subr.mxu0 0.0
        %1396 = vmatpush1.xpose.msra.mxu0 0.0
        %1397 = vmatprep.subr.mxu0 0.0
        %1398 = vmatpush1.xpose.msra.mxu0 0.0
        %1399 = vmatprep.subr.mxu0 0.0
        %1400 = vmatpush1.xpose.msra.mxu0 0.0
        %1401 = vmatprep.subr.mxu0 0.0
        %1402 = vmatpush1.xpose.msra.mxu0 0.0
        %1403 = vmatprep.subr.mxu0 0.0
        %1404 = vmatpush1.xpose.msra.mxu0 0.0
        %1405 = vmatprep.subr.mxu0 0.0
        %1406 = vmatpush1.xpose.msra.mxu0 0.0
        %1407 = vmatprep.subr.mxu0 0.0
        %1408 = vmatpush1.xpose.msra.mxu0 0.0
        %1409 = vmatprep.subr.mxu0 0.0
        %1410 = vmatpush1.xpose.msra.mxu0 0.0
        %1411 = vmatprep.subr.mxu0 0.0
        %1412 = vmatpush1.xpose.msra.mxu0 0.0
        %1413 = vmatprep.subr.mxu0 0.0
        %1414 = vmatpush1.xpose.msra.mxu0 0.0
        %1415 = vmatprep.subr.mxu0 0.0
        %1416 = vmatpush1.xpose.msra.mxu0 0.0
        %1417 = vmatprep.subr.mxu0 0.0
        %1418 = vmatpush1.xpose.msra.mxu0 0.0
        %1419 = vmatprep.subr.mxu0 0.0
        %1420 = vmatpush1.xpose.msra.mxu0 0.0
        %1421 = vmatprep.subr.mxu0 0.0
        %1422 = vmatpush1.xpose.msra.mxu0 %v1389
        %1423 = vmatprep.subr.mxu0 0.0
        %1424 = vmatpush2.xpose.msra.mxu0 0.0
        %1425 = vmatprep.subr.mxu0 0.0
        %1426 = vmatpush2.xpose.msra.mxu0 0.0
        %1427 = vmatprep.subr.mxu0 0.0
        %1428 = vmatpush2.xpose.msra.mxu0 0.0
        %1429 = vmatprep.subr.mxu0 0.0
        %1430 = vmatpush2.xpose.msra.mxu0 0.0
        %1431 = vmatprep.subr.mxu0 0.0
        %1432 = vmatpush2.xpose.msra.mxu0 0.0
        %1433 = vmatprep.subr.mxu0 0.0
        %1434 = vmatpush2.xpose.msra.mxu0 0.0
        %1435 = vmatprep.subr.mxu0 0.0
        %1436 = vmatpush2.xpose.msra.mxu0 0.0
        %1437 = vmatprep.subr.mxu0 0.0
        %1438 = vmatpush2.xpose.msra.mxu0 0.0
        %1439 = vmatprep.subr.mxu0 0.0
        %1440 = vmatpush2.xpose.msra.mxu0 0.0
        %1441 = vmatprep.subr.mxu0 0.0
        %1442 = vmatpush2.xpose.msra.mxu0 0.0
        %1443 = vmatprep.subr.mxu0 0.0
        %1444 = vmatpush2.xpose.msra.mxu0 0.0
        %1445 = vmatprep.subr.mxu0 0.0
        %1446 = vmatpush2.xpose.msra.mxu0 0.0
        %1447 = vmatprep.subr.mxu0 0.0
        %1448 = vmatpush2.xpose.msra.mxu0 0.0
        %1449 = vmatprep.subr.mxu0 0.0
        %1450 = vmatpush2.xpose.msra.mxu0 0.0
        %1451 = vmatprep.subr.mxu0 0.0
        %1452 = vmatpush2.xpose.msra.mxu0 0.0
        %1453 = vmatprep.subr.mxu0 0.0
        %1454 = vmatpush2.xpose.msra.mxu0 0.0
        %1455 = vmatprep.mubr.f32.mxu0 0.0
        %1456 = vmatmul.mubr.f32.gmra.mxu0 %v1386
        %v1457 = vpop.f32.mrf.mxu0
        %v1458 = vadd.f32 0.0, %v1457
        %v1459 = vpop.f32.mrf.mxu0
        %1460 = vdwg.mxu0
        %v1462 = vsel %vm1308, %v1014, 0
        %v1465 = vsel %vm1308, %v1160, 0
        %1467 = vmatprep.subr.mxu0 0.0
        %1468 = vmatpush1.xpose.msra.mxu0 0.0
        %1469 = vmatprep.subr.mxu0 0.0
        %1470 = vmatpush1.xpose.msra.mxu0 0.0
        %1471 = vmatprep.subr.mxu0 0.0
        %1472 = vmatpush1.xpose.msra.mxu0 0.0
        %1473 = vmatprep.subr.mxu0 0.0
        %1474 = vmatpush1.xpose.msra.mxu0 0.0
        %1475 = vmatprep.subr.mxu0 0.0
        %1476 = vmatpush1.xpose.msra.mxu0 0.0
        %1477 = vmatprep.subr.mxu0 0.0
        %1478 = vmatpush1.xpose.msra.mxu0 0.0
        %1479 = vmatprep.subr.mxu0 0.0
        %1480 = vmatpush1.xpose.msra.mxu0 0.0
        %1481 = vmatprep.subr.mxu0 0.0
        %1482 = vmatpush1.xpose.msra.mxu0 0.0
        %1483 = vmatprep.subr.mxu0 0.0
        %1484 = vmatpush1.xpose.msra.mxu0 0.0
        %1485 = vmatprep.subr.mxu0 0.0
        %1486 = vmatpush1.xpose.msra.mxu0 0.0
        %1487 = vmatprep.subr.mxu0 0.0
        %1488 = vmatpush1.xpose.msra.mxu0 0.0
        %1489 = vmatprep.subr.mxu0 0.0
        %1490 = vmatpush1.xpose.msra.mxu0 0.0
        %1491 = vmatprep.subr.mxu0 0.0
        %1492 = vmatpush1.xpose.msra.mxu0 0.0
        %1493 = vmatprep.subr.mxu0 0.0
        %1494 = vmatpush1.xpose.msra.mxu0 0.0
        %1495 = vmatprep.subr.mxu0 0.0
        %1496 = vmatpush1.xpose.msra.mxu0 0.0
        %1497 = vmatprep.subr.mxu0 0.0
        %1498 = vmatpush1.xpose.msra.mxu0 %v1465
        %1499 = vmatprep.subr.mxu0 0.0
        %1500 = vmatpush2.xpose.msra.mxu0 0.0
        %1501 = vmatprep.subr.mxu0 0.0
        %1502 = vmatpush2.xpose.msra.mxu0 0.0
        %1503 = vmatprep.subr.mxu0 0.0
        %1504 = vmatpush2.xpose.msra.mxu0 0.0
        %1505 = vmatprep.subr.mxu0 0.0
        %1506 = vmatpush2.xpose.msra.mxu0 0.0
        %1507 = vmatprep.subr.mxu0 0.0
        %1508 = vmatpush2.xpose.msra.mxu0 0.0
        %1509 = vmatprep.subr.mxu0 0.0
        %1510 = vmatpush2.xpose.msra.mxu0 0.0
        %1511 = vmatprep.subr.mxu0 0.0
        %1512 = vmatpush2.xpose.msra.mxu0 0.0
        %1513 = vmatprep.subr.mxu0 0.0
        %1514 = vmatpush2.xpose.msra.mxu0 0.0
        %1515 = vmatprep.subr.mxu0 0.0
        %1516 = vmatpush2.xpose.msra.mxu0 0.0
        %1517 = vmatprep.subr.mxu0 0.0
        %1518 = vmatpush2.xpose.msra.mxu0 0.0
        %1519 = vmatprep.subr.mxu0 0.0
        %1520 = vmatpush2.xpose.msra.mxu0 0.0
        %1521 = vmatprep.subr.mxu0 0.0
        %1522 = vmatpush2.xpose.msra.mxu0 0.0
        %1523 = vmatprep.subr.mxu0 0.0
        %1524 = vmatpush2.xpose.msra.mxu0 0.0
        %1525 = vmatprep.subr.mxu0 0.0
        %1526 = vmatpush2.xpose.msra.mxu0 0.0
        %1527 = vmatprep.subr.mxu0 0.0
        %1528 = vmatpush2.xpose.msra.mxu0 0.0
        %1529 = vmatprep.subr.mxu0 0.0
        %1530 = vmatpush2.xpose.msra.mxu0 0.0
        %1531 = vmatprep.mubr.f32.mxu0 0.0
        %1532 = vmatmul.mubr.f32.gmra.mxu0 %v1462
        %v1533 = vpop.f32.mrf.mxu0
        %v1534 = vadd.f32 0.0, %v1533
        %v1535 = vpop.f32.mrf.mxu0
        %1536 = vdwg.mxu0
        %v1538 = vsel %vm1308, %v1015, 0
        %v1541 = vsel %vm1308, %v1161, 0
        %1543 = vmatprep.subr.mxu0 0.0
        %1544 = vmatpush1.xpose.msra.mxu0 0.0
        %1545 = vmatprep.subr.mxu0 0.0
        %1546 = vmatpush1.xpose.msra.mxu0 0.0
        %1547 = vmatprep.subr.mxu0 0.0
        %1548 = vmatpush1.xpose.msra.mxu0 0.0
        %1549 = vmatprep.subr.mxu0 0.0
        %1550 = vmatpush1.xpose.msra.mxu0 0.0
        %1551 = vmatprep.subr.mxu0 0.0
        %1552 = vmatpush1.xpose.msra.mxu0 0.0
        %1553 = vmatprep.subr.mxu0 0.0
        %1554 = vmatpush1.xpose.msra.mxu0 0.0
        %1555 = vmatprep.subr.mxu0 0.0
        %1556 = vmatpush1.xpose.msra.mxu0 0.0
        %1557 = vmatprep.subr.mxu0 0.0
        %1558 = vmatpush1.xpose.msra.mxu0 0.0
        %1559 = vmatprep.subr.mxu0 0.0
        %1560 = vmatpush1.xpose.msra.mxu0 0.0
        %1561 = vmatprep.subr.mxu0 0.0
        %1562 = vmatpush1.xpose.msra.mxu0 0.0
        %1563 = vmatprep.subr.mxu0 0.0
        %1564 = vmatpush1.xpose.msra.mxu0 0.0
        %1565 = vmatprep.subr.mxu0 0.0
        %1566 = vmatpush1.xpose.msra.mxu0 0.0
        %1567 = vmatprep.subr.mxu0 0.0
        %1568 = vmatpush1.xpose.msra.mxu0 0.0
        %1569 = vmatprep.subr.mxu0 0.0
        %1570 = vmatpush1.xpose.msra.mxu0 0.0
        %1571 = vmatprep.subr.mxu0 0.0
        %1572 = vmatpush1.xpose.msra.mxu0 0.0
        %1573 = vmatprep.subr.mxu0 0.0
        %1574 = vmatpush1.xpose.msra.mxu0 %v1541
        %1575 = vmatprep.subr.mxu0 0.0
        %1576 = vmatpush2.xpose.msra.mxu0 0.0
        %1577 = vmatprep.subr.mxu0 0.0
        %1578 = vmatpush2.xpose.msra.mxu0 0.0
        %1579 = vmatprep.subr.mxu0 0.0
        %1580 = vmatpush2.xpose.msra.mxu0 0.0
        %1581 = vmatprep.subr.mxu0 0.0
        %1582 = vmatpush2.xpose.msra.mxu0 0.0
        %1583 = vmatprep.subr.mxu0 0.0
        %1584 = vmatpush2.xpose.msra.mxu0 0.0
        %1585 = vmatprep.subr.mxu0 0.0
        %1586 = vmatpush2.xpose.msra.mxu0 0.0
        %1587 = vmatprep.subr.mxu0 0.0
        %1588 = vmatpush2.xpose.msra.mxu0 0.0
        %1589 = vmatprep.subr.mxu0 0.0
        %1590 = vmatpush2.xpose.msra.mxu0 0.0
        %1591 = vmatprep.subr.mxu0 0.0
        %1592 = vmatpush2.xpose.msra.mxu0 0.0
        %1593 = vmatprep.subr.mxu0 0.0
        %1594 = vmatpush2.xpose.msra.mxu0 0.0
        %1595 = vmatprep.subr.mxu0 0.0
        %1596 = vmatpush2.xpose.msra.mxu0 0.0
        %1597 = vmatprep.subr.mxu0 0.0
        %1598 = vmatpush2.xpose.msra.mxu0 0.0
        %1599 = vmatprep.subr.mxu0 0.0
        %1600 = vmatpush2.xpose.msra.mxu0 0.0
        %1601 = vmatprep.subr.mxu0 0.0
        %1602 = vmatpush2.xpose.msra.mxu0 0.0
        %1603 = vmatprep.subr.mxu0 0.0
        %1604 = vmatpush2.xpose.msra.mxu0 0.0
        %1605 = vmatprep.subr.mxu0 0.0
        %1606 = vmatpush2.xpose.msra.mxu0 0.0
        %1607 = vmatprep.mubr.f32.mxu0 0.0
        %1608 = vmatmul.mubr.f32.gmra.mxu0 %v1538
        %v1609 = vpop.f32.mrf.mxu0
        %v1610 = vadd.f32 0.0, %v1609
        %v1611 = vpop.f32.mrf.mxu0
        %1612 = vdwg.mxu0
        %v1613 = vmul.f32 %v1382, 0.17677669
        %v1614 = vmul.f32 %v1458, 0.17677669
        %v1615 = vmul.f32 %v1534, 0.17677669
        %v1616 = vmul.f32 %v1610, 0.17677669
        %v1617 = vsel %vm1308, %v1613, -inf
        %1618 = vmax.xlane.f32.xlu0 %v1617
        %v1619 = vpop.xlane.xlu0 %1618
        %v1620 = vsel %vm1308, %v1614, -inf
        %1621 = vmax.xlane.f32.xlu0 %v1620
        %v1622 = vpop.xlane.xlu0 %1621
        %v1623 = vsel %vm1308, %v1615, -inf
        %1624 = vmax.xlane.f32.xlu0 %v1623
        %v1625 = vpop.xlane.xlu0 %1624
        %v1626 = vsel %vm1308, %v1616, -inf
        %1627 = vmax.xlane.f32.xlu0 %v1626
        %v1628 = vpop.xlane.xlu0 %1627
        %v1629 = vsub.f32 %v1613, %v1619
        %v1630 = vsub.f32 %v1614, %v1622
        %v1631 = vsub.f32 %v1615, %v1625
        %v1632 = vsub.f32 %v1616, %v1628
        %v1633 = vmul.f32 %v1629, 1.442695
        %v1634 = vpow.pop %v1633
        %v1635 = vmul.f32 %v1630, 1.442695
        %v1636 = vpow.pop %v1635
        %v1637 = vmul.f32 %v1631, 1.442695
        %v1638 = vpow.pop %v1637
        %v1639 = vmul.f32 %v1632, 1.442695
        %v1640 = vpow.pop %v1639
        %v1641 = vsel %vm1308, %v1634, 0.0
        %1642 = vadd.xlane.f32.xlu0 %v1641
        %v1643 = vpop.xlane.xlu0 %1642
        %v1644 = vsel %vm1308, %v1636, 0.0
        %1645 = vadd.xlane.f32.xlu0 %v1644
        %v1646 = vpop.xlane.xlu0 %1645
        %v1647 = vsel %vm1308, %v1638, 0.0
        %1648 = vadd.xlane.f32.xlu0 %v1647
        %v1649 = vpop.xlane.xlu0 %1648
        %v1650 = vsel %vm1308, %v1640, 0.0
        %1651 = vadd.xlane.f32.xlu0 %v1650
        %v1652 = vpop.xlane.xlu0 %1651
        %v1653 = vrcp.pop %v1643
        %v1654 = vrcp.pop %v1646
        %v1655 = vrcp.pop %v1649
        %v1656 = vrcp.pop %v1652
        %v1657 = vmul.f32 %v1634, %v1653
        %v1658 = vmul.f32 %v1636, %v1654
        %v1659 = vmul.f32 %v1638, %v1655
        %v1660 = vmul.f32 %v1640, %v1656
        %v1662 = vsel %vm1308, %v1657, 0
        %1664 = vmatprep.subr.mxu0 0.0
        %1665 = vmatpush1.msra.mxu0 0.0
        %1666 = vmatprep.subr.mxu0 0.0
        %1667 = vmatpush1.msra.mxu0 0.0
        %1668 = vmatprep.subr.mxu0 0.0
        %1669 = vmatpush1.msra.mxu0 0.0
        %1670 = vmatprep.subr.mxu0 0.0
        %1671 = vmatpush1.msra.mxu0 0.0
        %1672 = vmatprep.subr.mxu0 0.0
        %1673 = vmatpush1.msra.mxu0 0.0
        %1674 = vmatprep.subr.mxu0 0.0
        %1675 = vmatpush1.msra.mxu0 0.0
        %1676 = vmatprep.subr.mxu0 0.0
        %1677 = vmatpush1.msra.mxu0 0.0
        %1678 = vmatprep.subr.mxu0 0.0
        %1679 = vmatpush1.msra.mxu0 0.0
        %1680 = vmatprep.subr.mxu0 0.0
        %1681 = vmatpush1.msra.mxu0 0.0
        %1682 = vmatprep.subr.mxu0 0.0
        %1683 = vmatpush1.msra.mxu0 0.0
        %1684 = vmatprep.subr.mxu0 0.0
        %1685 = vmatpush1.msra.mxu0 0.0
        %1686 = vmatprep.subr.mxu0 0.0
        %1687 = vmatpush1.msra.mxu0 0.0
        %1688 = vmatprep.subr.mxu0 0.0
        %1689 = vmatpush1.msra.mxu0 0.0
        %1690 = vmatprep.subr.mxu0 0.0
        %1691 = vmatpush1.msra.mxu0 0.0
        %1692 = vmatprep.subr.mxu0 0.0
        %1693 = vmatpush1.msra.mxu0 0.0
        %1694 = vmatprep.subr.mxu0 0.0
        %1695 = vmatpush1.msra.mxu0 %v1304
        %1696 = vmatprep.subr.mxu0 0.0
        %1697 = vmatpush2.msra.mxu0 0.0
        %1698 = vmatprep.subr.mxu0 0.0
        %1699 = vmatpush2.msra.mxu0 0.0
        %1700 = vmatprep.subr.mxu0 0.0
        %1701 = vmatpush2.msra.mxu0 0.0
        %1702 = vmatprep.subr.mxu0 0.0
        %1703 = vmatpush2.msra.mxu0 0.0
        %1704 = vmatprep.subr.mxu0 0.0
        %1705 = vmatpush2.msra.mxu0 0.0
        %1706 = vmatprep.subr.mxu0 0.0
        %1707 = vmatpush2.msra.mxu0 0.0
        %1708 = vmatprep.subr.mxu0 0.0
        %1709 = vmatpush2.msra.mxu0 0.0
        %1710 = vmatprep.subr.mxu0 0.0
        %1711 = vmatpush2.msra.mxu0 0.0
        %1712 = vmatprep.subr.mxu0 0.0
        %1713 = vmatpush2.msra.mxu0 0.0
        %1714 = vmatprep.subr.mxu0 0.0
        %1715 = vmatpush2.msra.mxu0 0.0
        %1716 = vmatprep.subr.mxu0 0.0
        %1717 = vmatpush2.msra.mxu0 0.0
        %1718 = vmatprep.subr.mxu0 0.0
        %1719 = vmatpush2.msra.mxu0 0.0
        %1720 = vmatprep.subr.mxu0 0.0
        %1721 = vmatpush2.msra.mxu0 0.0
        %1722 = vmatprep.subr.mxu0 0.0
        %1723 = vmatpush2.msra.mxu0 0.0
        %1724 = vmatprep.subr.mxu0 0.0
        %1725 = vmatpush2.msra.mxu0 0.0
        %1726 = vmatprep.subr.mxu0 0.0
        %1727 = vmatpush2.msra.mxu0 0.0
        %1728 = vmatprep.mubr.f32.mxu0 0.0
        %1729 = vmatmul.mubr.f32.gmra.mxu0 %v1662
        %v1730 = vpop.f32.mrf.mxu0
        %v1731 = vadd.f32 0.0, %v1730
        %v1732 = vpop.f32.mrf.mxu0
        %1733 = vdwg.mxu0
        %v1735 = vsel %vm1308, %v1658, 0
        %1737 = vmatprep.subr.mxu0 0.0
        %1738 = vmatpush1.msra.mxu0 0.0
        %1739 = vmatprep.subr.mxu0 0.0
        %1740 = vmatpush1.msra.mxu0 0.0
        %1741 = vmatprep.subr.mxu0 0.0
        %1742 = vmatpush1.msra.mxu0 0.0
        %1743 = vmatprep.subr.mxu0 0.0
        %1744 = vmatpush1.msra.mxu0 0.0
        %1745 = vmatprep.subr.mxu0 0.0
        %1746 = vmatpush1.msra.mxu0 0.0
        %1747 = vmatprep.subr.mxu0 0.0
        %1748 = vmatpush1.msra.mxu0 0.0
        %1749 = vmatprep.subr.mxu0 0.0
        %1750 = vmatpush1.msra.mxu0 0.0
        %1751 = vmatprep.subr.mxu0 0.0
        %1752 = vmatpush1.msra.mxu0 0.0
        %1753 = vmatprep.subr.mxu0 0.0
        %1754 = vmatpush1.msra.mxu0 0.0
        %1755 = vmatprep.subr.mxu0 0.0
        %1756 = vmatpush1.msra.mxu0 0.0
        %1757 = vmatprep.subr.mxu0 0.0
        %1758 = vmatpush1.msra.mxu0 0.0
        %1759 = vmatprep.subr.mxu0 0.0
        %1760 = vmatpush1.msra.mxu0 0.0
        %1761 = vmatprep.subr.mxu0 0.0
        %1762 = vmatpush1.msra.mxu0 0.0
        %1763 = vmatprep.subr.mxu0 0.0
        %1764 = vmatpush1.msra.mxu0 0.0
        %1765 = vmatprep.subr.mxu0 0.0
        %1766 = vmatpush1.msra.mxu0 0.0
        %1767 = vmatprep.subr.mxu0 0.0
        %1768 = vmatpush1.msra.mxu0 %v1305
        %1769 = vmatprep.subr.mxu0 0.0
        %1770 = vmatpush2.msra.mxu0 0.0
        %1771 = vmatprep.subr.mxu0 0.0
        %1772 = vmatpush2.msra.mxu0 0.0
        %1773 = vmatprep.subr.mxu0 0.0
        %1774 = vmatpush2.msra.mxu0 0.0
        %1775 = vmatprep.subr.mxu0 0.0
        %1776 = vmatpush2.msra.mxu0 0.0
        %1777 = vmatprep.subr.mxu0 0.0
        %1778 = vmatpush2.msra.mxu0 0.0
        %1779 = vmatprep.subr.mxu0 0.0
        %1780 = vmatpush2.msra.mxu0 0.0
        %1781 = vmatprep.subr.mxu0 0.0
        %1782 = vmatpush2.msra.mxu0 0.0
        %1783 = vmatprep.subr.mxu0 0.0
        %1784 = vmatpush2.msra.mxu0 0.0
        %1785 = vmatprep.subr.mxu0 0.0
        %1786 = vmatpush2.msra.mxu0 0.0
        %1787 = vmatprep.subr.mxu0 0.0
        %1788 = vmatpush2.msra.mxu0 0.0
        %1789 = vmatprep.subr.mxu0 0.0
        %1790 = vmatpush2.msra.mxu0 0.0
        %1791 = vmatprep.subr.mxu0 0.0
        %1792 = vmatpush2.msra.mxu0 0.0
        %1793 = vmatprep.subr.mxu0 0.0
        %1794 = vmatpush2.msra.mxu0 0.0
        %1795 = vmatprep.subr.mxu0 0.0
        %1796 = vmatpush2.msra.mxu0 0.0
        %1797 = vmatprep.subr.mxu0 0.0
        %1798 = vmatpush2.msra.mxu0 0.0
        %1799 = vmatprep.subr.mxu0 0.0
        %1800 = vmatpush2.msra.mxu0 0.0
        %1801 = vmatprep.mubr.f32.mxu0 0.0
        %1802 = vmatmul.mubr.f32.gmra.mxu0 %v1735
        %v1803 = vpop.f32.mrf.mxu0
        %v1804 = vadd.f32 0.0, %v1803
        %v1805 = vpop.f32.mrf.mxu0
        %1806 = vdwg.mxu0
        %v1808 = vsel %vm1308, %v1659, 0
        %1810 = vmatprep.subr.mxu0 0.0
        %1811 = vmatpush1.msra.mxu0 0.0
        %1812 = vmatprep.subr.mxu0 0.0
        %1813 = vmatpush1.msra.mxu0 0.0
        %1814 = vmatprep.subr.mxu0 0.0
        %1815 = vmatpush1.msra.mxu0 0.0
        %1816 = vmatprep.subr.mxu0 0.0
        %1817 = vmatpush1.msra.mxu0 0.0
        %1818 = vmatprep.subr.mxu0 0.0
        %1819 = vmatpush1.msra.mxu0 0.0
        %1820 = vmatprep.subr.mxu0 0.0
        %1821 = vmatpush1.msra.mxu0 0.0
        %1822 = vmatprep.subr.mxu0 0.0
        %1823 = vmatpush1.msra.mxu0 0.0
        %1824 = vmatprep.subr.mxu0 0.0
        %1825 = vmatpush1.msra.mxu0 0.0
        %1826 = vmatprep.subr.mxu0 0.0
        %1827 = vmatpush1.msra.mxu0 0.0
        %1828 = vmatprep.subr.mxu0 0.0
        %1829 = vmatpush1.msra.mxu0 0.0
        %1830 = vmatprep.subr.mxu0 0.0
        %1831 = vmatpush1.msra.mxu0 0.0
        %1832 = vmatprep.subr.mxu0 0.0
        %1833 = vmatpush1.msra.mxu0 0.0
        %1834 = vmatprep.subr.mxu0 0.0
        %1835 = vmatpush1.msra.mxu0 0.0
        %1836 = vmatprep.subr.mxu0 0.0
        %1837 = vmatpush1.msra.mxu0 0.0
        %1838 = vmatprep.subr.mxu0 0.0
        %1839 = vmatpush1.msra.mxu0 0.0
        %1840 = vmatprep.subr.mxu0 0.0
        %1841 = vmatpush1.msra.mxu0 %v1306
        %1842 = vmatprep.subr.mxu0 0.0
        %1843 = vmatpush2.msra.mxu0 0.0
        %1844 = vmatprep.subr.mxu0 0.0
        %1845 = vmatpush2.msra.mxu0 0.0
        %1846 = vmatprep.subr.mxu0 0.0
        %1847 = vmatpush2.msra.mxu0 0.0
        %1848 = vmatprep.subr.mxu0 0.0
        %1849 = vmatpush2.msra.mxu0 0.0
        %1850 = vmatprep.subr.mxu0 0.0
        %1851 = vmatpush2.msra.mxu0 0.0
        %1852 = vmatprep.subr.mxu0 0.0
        %1853 = vmatpush2.msra.mxu0 0.0
        %1854 = vmatprep.subr.mxu0 0.0
        %1855 = vmatpush2.msra.mxu0 0.0
        %1856 = vmatprep.subr.mxu0 0.0
        %1857 = vmatpush2.msra.mxu0 0.0
        %1858 = vmatprep.subr.mxu0 0.0
        %1859 = vmatpush2.msra.mxu0 0.0
        %1860 = vmatprep.subr.mxu0 0.0
        %1861 = vmatpush2.msra.mxu0 0.0
        %1862 = vmatprep.subr.mxu0 0.0
        %1863 = vmatpush2.msra.mxu0 0.0
        %1864 = vmatprep.subr.mxu0 0.0
        %1865 = vmatpush2.msra.mxu0 0.0
        %1866 = vmatprep.subr.mxu0 0.0
        %1867 = vmatpush2.msra.mxu0 0.0
        %1868 = vmatprep.subr.mxu0 0.0
        %1869 = vmatpush2.msra.mxu0 0.0
        %1870 = vmatprep.subr.mxu0 0.0
        %1871 = vmatpush2.msra.mxu0 0.0
        %1872 = vmatprep.subr.mxu0 0.0
        %1873 = vmatpush2.msra.mxu0 0.0
        %1874 = vmatprep.mubr.f32.mxu0 0.0
        %1875 = vmatmul.mubr.f32.gmra.mxu0 %v1808
        %v1876 = vpop.f32.mrf.mxu0
        %v1877 = vadd.f32 0.0, %v1876
        %v1878 = vpop.f32.mrf.mxu0
        %1879 = vdwg.mxu0
        %v1881 = vsel %vm1308, %v1660, 0
        %1883 = vmatprep.subr.mxu0 0.0
        %1884 = vmatpush1.msra.mxu0 0.0
        %1885 = vmatprep.subr.mxu0 0.0
        %1886 = vmatpush1.msra.mxu0 0.0
        %1887 = vmatprep.subr.mxu0 0.0
        %1888 = vmatpush1.msra.mxu0 0.0
        %1889 = vmatprep.subr.mxu0 0.0
        %1890 = vmatpush1.msra.mxu0 0.0
        %1891 = vmatprep.subr.mxu0 0.0
        %1892 = vmatpush1.msra.mxu0 0.0
        %1893 = vmatprep.subr.mxu0 0.0
        %1894 = vmatpush1.msra.mxu0 0.0
        %1895 = vmatprep.subr.mxu0 0.0
        %1896 = vmatpush1.msra.mxu0 0.0
        %1897 = vmatprep.subr.mxu0 0.0
        %1898 = vmatpush1.msra.mxu0 0.0
        %1899 = vmatprep.subr.mxu0 0.0
        %1900 = vmatpush1.msra.mxu0 0.0
        %1901 = vmatprep.subr.mxu0 0.0
        %1902 = vmatpush1.msra.mxu0 0.0
        %1903 = vmatprep.subr.mxu0 0.0
        %1904 = vmatpush1.msra.mxu0 0.0
        %1905 = vmatprep.subr.mxu0 0.0
        %1906 = vmatpush1.msra.mxu0 0.0
        %1907 = vmatprep.subr.mxu0 0.0
        %1908 = vmatpush1.msra.mxu0 0.0
        %1909 = vmatprep.subr.mxu0 0.0
        %1910 = vmatpush1.msra.mxu0 0.0
        %1911 = vmatprep.subr.mxu0 0.0
        %1912 = vmatpush1.msra.mxu0 0.0
        %1913 = vmatprep.subr.mxu0 0.0
        %1914 = vmatpush1.msra.mxu0 %v1307
        %1915 = vmatprep.subr.mxu0 0.0
        %1916 = vmatpush2.msra.mxu0 0.0
        %1917 = vmatprep.subr.mxu0 0.0
        %1918 = vmatpush2.msra.mxu0 0.0
        %1919 = vmatprep.subr.mxu0 0.0
        %1920 = vmatpush2.msra.mxu0 0.0
        %1921 = vmatprep.subr.mxu0 0.0
        %1922 = vmatpush2.msra.mxu0 0.0
        %1923 = vmatprep.subr.mxu0 0.0
        %1924 = vmatpush2.msra.mxu0 0.0
        %1925 = vmatprep.subr.mxu0 0.0
        %1926 = vmatpush2.msra.mxu0 0.0
        %1927 = vmatprep.subr.mxu0 0.0
        %1928 = vmatpush2.msra.mxu0 0.0
        %1929 = vmatprep.subr.mxu0 0.0
        %1930 = vmatpush2.msra.mxu0 0.0
        %1931 = vmatprep.subr.mxu0 0.0
        %1932 = vmatpush2.msra.mxu0 0.0
        %1933 = vmatprep.subr.mxu0 0.0
        %1934 = vmatpush2.msra.mxu0 0.0
        %1935 = vmatprep.subr.mxu0 0.0
        %1936 = vmatpush2.msra.mxu0 0.0
        %1937 = vmatprep.subr.mxu0 0.0
        %1938 = vmatpush2.msra.mxu0 0.0
        %1939 = vmatprep.subr.mxu0 0.0
        %1940 = vmatpush2.msra.mxu0 0.0
        %1941 = vmatprep.subr.mxu0 0.0
        %1942 = vmatpush2.msra.mxu0 0.0
        %1943 = vmatprep.subr.mxu0 0.0
        %1944 = vmatpush2.msra.mxu0 0.0
        %1945 = vmatprep.subr.mxu0 0.0
        %1946 = vmatpush2.msra.mxu0 0.0
        %1947 = vmatprep.mubr.f32.mxu0 0.0
        %1948 = vmatmul.mubr.f32.gmra.mxu0 %v1881
        %v1949 = vpop.f32.mrf.mxu0
        %v1950 = vadd.f32 0.0, %v1949
        %v1951 = vpop.f32.mrf.mxu0
        %1952 = vdwg.mxu0
        %v1953 = vld [vmem:[%s508] sm:$0xff]
        %v1954 = vld [vmem:[%s508 + $0x8] sm:$0xff]
        %v1955 = vld [vmem:[%s508 + $0x10] sm:$0xff]
        %v1956 = vld [vmem:[%s508 + $0x18] sm:$0xff]
        %v1958 = vsel %vm1308, %v1731, 0
        %1960 = vmatprep.subr.mxu0 0.0
        %1961 = vmatpush1.msra.mxu0 0.0
        %1962 = vmatprep.subr.mxu0 0.0
        %1963 = vmatpush1.msra.mxu0 0.0
        %1964 = vmatprep.subr.mxu0 0.0
        %1965 = vmatpush1.msra.mxu0 0.0
        %1966 = vmatprep.subr.mxu0 0.0
        %1967 = vmatpush1.msra.mxu0 0.0
        %1968 = vmatprep.subr.mxu0 0.0
        %1969 = vmatpush1.msra.mxu0 0.0
        %1970 = vmatprep.subr.mxu0 0.0
        %1971 = vmatpush1.msra.mxu0 0.0
        %1972 = vmatprep.subr.mxu0 0.0
        %1973 = vmatpush1.msra.mxu0 0.0
        %1974 = vmatprep.subr.mxu0 0.0
        %1975 = vmatpush1.msra.mxu0 0.0
        %1976 = vmatprep.subr.mxu0 0.0
        %1977 = vmatpush1.msra.mxu0 0.0
        %1978 = vmatprep.subr.mxu0 0.0
        %1979 = vmatpush1.msra.mxu0 0.0
        %1980 = vmatprep.subr.mxu0 0.0
        %1981 = vmatpush1.msra.mxu0 0.0
        %1982 = vmatprep.subr.mxu0 0.0
        %1983 = vmatpush1.msra.mxu0 0.0
        %1984 = vmatprep.subr.mxu0 0.0
        %1985 = vmatpush1.msra.mxu0 0.0
        %1986 = vmatprep.subr.mxu0 0.0
        %1987 = vmatpush1.msra.mxu0 0.0
        %1988 = vmatprep.subr.mxu0 0.0
        %1989 = vmatpush1.msra.mxu0 0.0
        %1990 = vmatprep.subr.mxu0 0.0
        %1991 = vmatpush1.msra.mxu0 %v1953
        %1992 = vmatprep.subr.mxu0 0.0
        %1993 = vmatpush2.msra.mxu0 0.0
        %1994 = vmatprep.subr.mxu0 0.0
        %1995 = vmatpush2.msra.mxu0 0.0
        %1996 = vmatprep.subr.mxu0 0.0
        %1997 = vmatpush2.msra.mxu0 0.0
        %1998 = vmatprep.subr.mxu0 0.0
        %1999 = vmatpush2.msra.mxu0 0.0
        %2000 = vmatprep.subr.mxu0 0.0
        %2001 = vmatpush2.msra.mxu0 0.0
        %2002 = vmatprep.subr.mxu0 0.0
        %2003 = vmatpush2.msra.mxu0 0.0
        %2004 = vmatprep.subr.mxu0 0.0
        %2005 = vmatpush2.msra.mxu0 0.0
        %2006 = vmatprep.subr.mxu0 0.0
        %2007 = vmatpush2.msra.mxu0 0.0
        %2008 = vmatprep.subr.mxu0 0.0
        %2009 = vmatpush2.msra.mxu0 0.0
        %2010 = vmatprep.subr.mxu0 0.0
        %2011 = vmatpush2.msra.mxu0 0.0
        %2012 = vmatprep.subr.mxu0 0.0
        %2013 = vmatpush2.msra.mxu0 0.0
        %2014 = vmatprep.subr.mxu0 0.0
        %2015 = vmatpush2.msra.mxu0 0.0
        %2016 = vmatprep.subr.mxu0 0.0
        %2017 = vmatpush2.msra.mxu0 0.0
        %2018 = vmatprep.subr.mxu0 0.0
        %2019 = vmatpush2.msra.mxu0 0.0
        %2020 = vmatprep.subr.mxu0 0.0
        %2021 = vmatpush2.msra.mxu0 0.0
        %2022 = vmatprep.subr.mxu0 0.0
        %2023 = vmatpush2.msra.mxu0 0.0
        %2024 = vmatprep.mubr.f32.mxu0 0.0
        %2025 = vmatmul.mubr.f32.gmra.mxu0 %v1958
        %v2026 = vpop.f32.mrf.mxu0
        %v2027 = vadd.f32 0.0, %v2026
        %v2028 = vpop.f32.mrf.mxu0
        %2029 = vdwg.mxu0
        %v2031 = vsel %vm1308, %v1804, 0
        %2033 = vmatprep.subr.mxu0 0.0
        %2034 = vmatpush1.msra.mxu0 0.0
        %2035 = vmatprep.subr.mxu0 0.0
        %2036 = vmatpush1.msra.mxu0 0.0
        %2037 = vmatprep.subr.mxu0 0.0
        %2038 = vmatpush1.msra.mxu0 0.0
        %2039 = vmatprep.subr.mxu0 0.0
        %2040 = vmatpush1.msra.mxu0 0.0
        %2041 = vmatprep.subr.mxu0 0.0
        %2042 = vmatpush1.msra.mxu0 0.0
        %2043 = vmatprep.subr.mxu0 0.0
        %2044 = vmatpush1.msra.mxu0 0.0
        %2045 = vmatprep.subr.mxu0 0.0
        %2046 = vmatpush1.msra.mxu0 0.0
        %2047 = vmatprep.subr.mxu0 0.0
        %2048 = vmatpush1.msra.mxu0 0.0
        %2049 = vmatprep.subr.mxu0 0.0
        %2050 = vmatpush1.msra.mxu0 0.0
        %2051 = vmatprep.subr.mxu0 0.0
        %2052 = vmatpush1.msra.mxu0 0.0
        %2053 = vmatprep.subr.mxu0 0.0
        %2054 = vmatpush1.msra.mxu0 0.0
        %2055 = vmatprep.subr.mxu0 0.0
        %2056 = vmatpush1.msra.mxu0 0.0
        %2057 = vmatprep.subr.mxu0 0.0
        %2058 = vmatpush1.msra.mxu0 0.0
        %2059 = vmatprep.subr.mxu0 0.0
        %2060 = vmatpush1.msra.mxu0 0.0
        %2061 = vmatprep.subr.mxu0 0.0
        %2062 = vmatpush1.msra.mxu0 0.0
        %2063 = vmatprep.subr.mxu0 0.0
        %2064 = vmatpush1.msra.mxu0 %v1954
        %2065 = vmatprep.subr.mxu0 0.0
        %2066 = vmatpush2.msra.mxu0 0.0
        %2067 = vmatprep.subr.mxu0 0.0
        %2068 = vmatpush2.msra.mxu0 0.0
        %2069 = vmatprep.subr.mxu0 0.0
        %2070 = vmatpush2.msra.mxu0 0.0
        %2071 = vmatprep.subr.mxu0 0.0
        %2072 = vmatpush2.msra.mxu0 0.0
        %2073 = vmatprep.subr.mxu0 0.0
        %2074 = vmatpush2.msra.mxu0 0.0
        %2075 = vmatprep.subr.mxu0 0.0
        %2076 = vmatpush2.msra.mxu0 0.0
        %2077 = vmatprep.subr.mxu0 0.0
        %2078 = vmatpush2.msra.mxu0 0.0
        %2079 = vmatprep.subr.mxu0 0.0
        %2080 = vmatpush2.msra.mxu0 0.0
        %2081 = vmatprep.subr.mxu0 0.0
        %2082 = vmatpush2.msra.mxu0 0.0
        %2083 = vmatprep.subr.mxu0 0.0
        %2084 = vmatpush2.msra.mxu0 0.0
        %2085 = vmatprep.subr.mxu0 0.0
        %2086 = vmatpush2.msra.mxu0 0.0
        %2087 = vmatprep.subr.mxu0 0.0
        %2088 = vmatpush2.msra.mxu0 0.0
        %2089 = vmatprep.subr.mxu0 0.0
        %2090 = vmatpush2.msra.mxu0 0.0
        %2091 = vmatprep.subr.mxu0 0.0
        %2092 = vmatpush2.msra.mxu0 0.0
        %2093 = vmatprep.subr.mxu0 0.0
        %2094 = vmatpush2.msra.mxu0 0.0
        %2095 = vmatprep.subr.mxu0 0.0
        %2096 = vmatpush2.msra.mxu0 0.0
        %2097 = vmatprep.mubr.f32.mxu0 0.0
        %2098 = vmatmul.mubr.f32.gmra.mxu0 %v2031
        %v2099 = vpop.f32.mrf.mxu0
        %v2100 = vadd.f32 0.0, %v2099
        %v2101 = vpop.f32.mrf.mxu0
        %2102 = vdwg.mxu0
        %v2104 = vsel %vm1308, %v1877, 0
        %2106 = vmatprep.subr.mxu0 0.0
        %2107 = vmatpush1.msra.mxu0 0.0
        %2108 = vmatprep.subr.mxu0 0.0
        %2109 = vmatpush1.msra.mxu0 0.0
        %2110 = vmatprep.subr.mxu0 0.0
        %2111 = vmatpush1.msra.mxu0 0.0
        %2112 = vmatprep.subr.mxu0 0.0
        %2113 = vmatpush1.msra.mxu0 0.0
        %2114 = vmatprep.subr.mxu0 0.0
        %2115 = vmatpush1.msra.mxu0 0.0
        %2116 = vmatprep.subr.mxu0 0.0
        %2117 = vmatpush1.msra.mxu0 0.0
        %2118 = vmatprep.subr.mxu0 0.0
        %2119 = vmatpush1.msra.mxu0 0.0
        %2120 = vmatprep.subr.mxu0 0.0
        %2121 = vmatpush1.msra.mxu0 0.0
        %2122 = vmatprep.subr.mxu0 0.0
        %2123 = vmatpush1.msra.mxu0 0.0
        %2124 = vmatprep.subr.mxu0 0.0
        %2125 = vmatpush1.msra.mxu0 0.0
        %2126 = vmatprep.subr.mxu0 0.0
        %2127 = vmatpush1.msra.mxu0 0.0
        %2128 = vmatprep.subr.mxu0 0.0
        %2129 = vmatpush1.msra.mxu0 0.0
        %2130 = vmatprep.subr.mxu0 0.0
        %2131 = vmatpush1.msra.mxu0 0.0
        %2132 = vmatprep.subr.mxu0 0.0
        %2133 = vmatpush1.msra.mxu0 0.0
        %2134 = vmatprep.subr.mxu0 0.0
        %2135 = vmatpush1.msra.mxu0 0.0
        %2136 = vmatprep.subr.mxu0 0.0
        %2137 = vmatpush1.msra.mxu0 %v1955
        %2138 = vmatprep.subr.mxu0 0.0
        %2139 = vmatpush2.msra.mxu0 0.0
        %2140 = vmatprep.subr.mxu0 0.0
        %2141 = vmatpush2.msra.mxu0 0.0
        %2142 = vmatprep.subr.mxu0 0.0
        %2143 = vmatpush2.msra.mxu0 0.0
        %2144 = vmatprep.subr.mxu0 0.0
        %2145 = vmatpush2.msra.mxu0 0.0
        %2146 = vmatprep.subr.mxu0 0.0
        %2147 = vmatpush2.msra.mxu0 0.0
        %2148 = vmatprep.subr.mxu0 0.0
        %2149 = vmatpush2.msra.mxu0 0.0
        %2150 = vmatprep.subr.mxu0 0.0
        %2151 = vmatpush2.msra.mxu0 0.0
        %2152 = vmatprep.subr.mxu0 0.0
        %2153 = vmatpush2.msra.mxu0 0.0
        %2154 = vmatprep.subr.mxu0 0.0
        %2155 = vmatpush2.msra.mxu0 0.0
        %2156 = vmatprep.subr.mxu0 0.0
        %2157 = vmatpush2.msra.mxu0 0.0
        %2158 = vmatprep.subr.mxu0 0.0
        %2159 = vmatpush2.msra.mxu0 0.0
        %2160 = vmatprep.subr.mxu0 0.0
        %2161 = vmatpush2.msra.mxu0 0.0
        %2162 = vmatprep.subr.mxu0 0.0
        %2163 = vmatpush2.msra.mxu0 0.0
        %2164 = vmatprep.subr.mxu0 0.0
        %2165 = vmatpush2.msra.mxu0 0.0
        %2166 = vmatprep.subr.mxu0 0.0
        %2167 = vmatpush2.msra.mxu0 0.0
        %2168 = vmatprep.subr.mxu0 0.0
        %2169 = vmatpush2.msra.mxu0 0.0
        %2170 = vmatprep.mubr.f32.mxu0 0.0
        %2171 = vmatmul.mubr.f32.gmra.mxu0 %v2104
        %v2172 = vpop.f32.mrf.mxu0
        %v2173 = vadd.f32 0.0, %v2172
        %v2174 = vpop.f32.mrf.mxu0
        %2175 = vdwg.mxu0
        %v2177 = vsel %vm1308, %v1950, 0
        %2179 = vmatprep.subr.mxu0 0.0
        %2180 = vmatpush1.msra.mxu0 0.0
        %2181 = vmatprep.subr.mxu0 0.0
        %2182 = vmatpush1.msra.mxu0 0.0
        %2183 = vmatprep.subr.mxu0 0.0
        %2184 = vmatpush1.msra.mxu0 0.0
        %2185 = vmatprep.subr.mxu0 0.0
        %2186 = vmatpush1.msra.mxu0 0.0
        %2187 = vmatprep.subr.mxu0 0.0
        %2188 = vmatpush1.msra.mxu0 0.0
        %2189 = vmatprep.subr.mxu0 0.0
        %2190 = vmatpush1.msra.mxu0 0.0
        %2191 = vmatprep.subr.mxu0 0.0
        %2192 = vmatpush1.msra.mxu0 0.0
        %2193 = vmatprep.subr.mxu0 0.0
        %2194 = vmatpush1.msra.mxu0 0.0
        %2195 = vmatprep.subr.mxu0 0.0
        %2196 = vmatpush1.msra.mxu0 0.0
        %2197 = vmatprep.subr.mxu0 0.0
        %2198 = vmatpush1.msra.mxu0 0.0
        %2199 = vmatprep.subr.mxu0 0.0
        %2200 = vmatpush1.msra.mxu0 0.0
        %2201 = vmatprep.subr.mxu0 0.0
        %2202 = vmatpush1.msra.mxu0 0.0
        %2203 = vmatprep.subr.mxu0 0.0
        %2204 = vmatpush1.msra.mxu0 0.0
        %2205 = vmatprep.subr.mxu0 0.0
        %2206 = vmatpush1.msra.mxu0 0.0
        %2207 = vmatprep.subr.mxu0 0.0
        %2208 = vmatpush1.msra.mxu0 0.0
        %2209 = vmatprep.subr.mxu0 0.0
        %2210 = vmatpush1.msra.mxu0 %v1956
        %2211 = vmatprep.subr.mxu0 0.0
        %2212 = vmatpush2.msra.mxu0 0.0
        %2213 = vmatprep.subr.mxu0 0.0
        %2214 = vmatpush2.msra.mxu0 0.0
        %2215 = vmatprep.subr.mxu0 0.0
        %2216 = vmatpush2.msra.mxu0 0.0
        %2217 = vmatprep.subr.mxu0 0.0
        %2218 = vmatpush2.msra.mxu0 0.0
        %2219 = vmatprep.subr.mxu0 0.0
        %2220 = vmatpush2.msra.mxu0 0.0
        %2221 = vmatprep.subr.mxu0 0.0
        %2222 = vmatpush2.msra.mxu0 0.0
        %2223 = vmatprep.subr.mxu0 0.0
        %2224 = vmatpush2.msra.mxu0 0.0
        %2225 = vmatprep.subr.mxu0 0.0
        %2226 = vmatpush2.msra.mxu0 0.0
        %2227 = vmatprep.subr.mxu0 0.0
        %2228 = vmatpush2.msra.mxu0 0.0
        %2229 = vmatprep.subr.mxu0 0.0
        %2230 = vmatpush2.msra.mxu0 0.0
        %2231 = vmatprep.subr.mxu0 0.0
        %2232 = vmatpush2.msra.mxu0 0.0
        %2233 = vmatprep.subr.mxu0 0.0
        %2234 = vmatpush2.msra.mxu0 0.0
        %2235 = vmatprep.subr.mxu0 0.0
        %2236 = vmatpush2.msra.mxu0 0.0
        %2237 = vmatprep.subr.mxu0 0.0
        %2238 = vmatpush2.msra.mxu0 0.0
        %2239 = vmatprep.subr.mxu0 0.0
        %2240 = vmatpush2.msra.mxu0 0.0
        %2241 = vmatprep.subr.mxu0 0.0
        %2242 = vmatpush2.msra.mxu0 0.0
        %2243 = vmatprep.mubr.f32.mxu0 0.0
        %2244 = vmatmul.mubr.f32.gmra.mxu0 %v2177
        %v2245 = vpop.f32.mrf.mxu0
        %v2246 = vadd.f32 0.0, %v2245
        %v2247 = vpop.f32.mrf.mxu0
        %2248 = vdwg.mxu0
        %v2249 = vsel %vm645, %v2027, 0.0
        %v2250 = vsel %vm645, %v2100, 0.0
        %v2251 = vadd.f32 %v2249, %v2250
        %v2252 = vsel %vm645, %v2173, 0.0
        %v2253 = vadd.f32 %v2251, %v2252
        %v2254 = vsel %vm645, %v2246, 0.0
        %v2255 = vadd.f32 %v2253, %v2254
        %v2256 = vlaneseq
        %v2257 = vshrl.u32 %v2256, 7
        %v2258 = vsub.s32 0, %v2257
        %v2259 = vrot.slane %v639, %v2258
        %v2260 = vadd.f32 %v2255, %v2259
        %v2261 = vadd.f32 %v2260, %v638
        %v2262 = vsel %vm645, %v2261, 0.0
        %2263 = vadd.xlane.f32.xlu0 %v2262
        %v2264 = vpop.xlane.xlu0 %2263
        %v2265 = vrcp.pop 32.0
        %v2266 = vmul.f32 %v2264, %v2265
        %v2267 = vsub.f32 %v2261, %v2266
        %v2268 = vmul.f32 %v2267, %v2267
        %v2269 = vsel %vm645, %v2268, 0.0
        %2270 = vadd.xlane.f32.xlu0 %v2269
        %v2271 = vpop.xlane.xlu0 %2270
        %v2272 = vmul.f32 %v2271, %v2265
        %v2273 = vadd.f32 %v2272, 1e-05
        %v2274 = vrsqrt.pop %v2273
        %v2275 = vmul.f32 %v2267, %v2274
        %v2276 = vlaneseq
        %v2277 = vshrl.u32 %v2276, 7
        %v2278 = vsub.s32 1, %v2277
        %v2279 = vrot.slane %v639, %v2278
        %v2280 = vmul.f32 %v2275, %v2279
        %v2281 = vlaneseq
        %v2282 = vshrl.u32 %v2281, 7
        %v2283 = vsub.s32 2, %v2282
        %v2284 = vrot.slane %v639, %v2283
        %v2285 = vadd.f32 %v2280, %v2284
        %v2286 = vld [vmem:[%s517] sm:$0xff]
        %v2287 = vld [vmem:[%s517 + $0x8] sm:$0xff]
        %v2288 = vld [vmem:[%s517 + $0x10] sm:$0xff]
        %v2289 = vld [vmem:[%s517 + $0x18] sm:$0xff]
        %v2291 = vlaneseq
        %v2292 = vshrl.u32 %v2291, 7
        %v2293 = vsub.s32 0, %v2292
        %v2294 = vrot.slane %v640, %v2293
        %v2297 = vsel %vm645, %v2285, 0
        %2299 = vmatprep.subr.mxu0 0.0
        %2300 = vmatpush1.msra.mxu0 0.0
        %2301 = vmatprep.subr.mxu0 0.0
        %2302 = vmatpush1.msra.mxu0 0.0
        %2303 = vmatprep.subr.mxu0 0.0
        %2304 = vmatpush1.msra.mxu0 0.0
        %2305 = vmatprep.subr.mxu0 0.0
        %2306 = vmatpush1.msra.mxu0 0.0
        %2307 = vmatprep.subr.mxu0 0.0
        %2308 = vmatpush1.msra.mxu0 0.0
        %2309 = vmatprep.subr.mxu0 0.0
        %2310 = vmatpush1.msra.mxu0 0.0
        %2311 = vmatprep.subr.mxu0 0.0
        %2312 = vmatpush1.msra.mxu0 0.0
        %2313 = vmatprep.subr.mxu0 0.0
        %2314 = vmatpush1.msra.mxu0 0.0
        %2315 = vmatprep.subr.mxu0 0.0
        %2316 = vmatpush1.msra.mxu0 0.0
        %2317 = vmatprep.subr.mxu0 0.0
        %2318 = vmatpush1.msra.mxu0 0.0
        %2319 = vmatprep.subr.mxu0 0.0
        %2320 = vmatpush1.msra.mxu0 0.0
        %2321 = vmatprep.subr.mxu0 0.0
        %2322 = vmatpush1.msra.mxu0 0.0
        %2323 = vmatprep.subr.mxu0 0.0
        %2324 = vmatpush1.msra.mxu0 %v2289
        %2325 = vmatprep.subr.mxu0 0.0
        %2326 = vmatpush1.msra.mxu0 %v2288
        %2327 = vmatprep.subr.mxu0 0.0
        %2328 = vmatpush1.msra.mxu0 %v2287
        %2329 = vmatprep.subr.mxu0 0.0
        %2330 = vmatpush1.msra.mxu0 %v2286
        %2331 = vmatprep.subr.mxu0 0.0
        %2332 = vmatpush2.msra.mxu0 0.0
        %2333 = vmatprep.subr.mxu0 0.0
        %2334 = vmatpush2.msra.mxu0 0.0
        %2335 = vmatprep.subr.mxu0 0.0
        %2336 = vmatpush2.msra.mxu0 0.0
        %2337 = vmatprep.subr.mxu0 0.0
        %2338 = vmatpush2.msra.mxu0 0.0
        %2339 = vmatprep.subr.mxu0 0.0
        %2340 = vmatpush2.msra.mxu0 0.0
        %2341 = vmatprep.subr.mxu0 0.0
        %2342 = vmatpush2.msra.mxu0 0.0
        %2343 = vmatprep.subr.mxu0 0.0
        %2344 = vmatpush2.msra.mxu0 0.0
        %2345 = vmatprep.subr.mxu0 0.0
        %2346 = vmatpush2.msra.mxu0 0.0
        %2347 = vmatprep.subr.mxu0 0.0
        %2348 = vmatpush2.msra.mxu0 0.0
        %2349 = vmatprep.subr.mxu0 0.0
        %2350 = vmatpush2.msra.mxu0 0.0
        %2351 = vmatprep.subr.mxu0 0.0
        %2352 = vmatpush2.msra.mxu0 0.0
        %2353 = vmatprep.subr.mxu0 0.0
        %2354 = vmatpush2.msra.mxu0 0.0
        %2355 = vmatprep.subr.mxu0 0.0
        %2356 = vmatpush2.msra.mxu0 0.0
        %2357 = vmatprep.subr.mxu0 0.0
        %2358 = vmatpush2.msra.mxu0 0.0
        %2359 = vmatprep.subr.mxu0 0.0
        %2360 = vmatpush2.msra.mxu0 0.0
        %2361 = vmatprep.subr.mxu0 0.0
        %2362 = vmatpush2.msra.mxu0 0.0
        %2363 = vmatprep.mubr.f32.mxu0 0.0
        %2364 = vmatmul.mubr.f32.gmra.mxu0 %v2297
        %v2365 = vpop.f32.mrf.mxu0
        %v2366 = vadd.f32 %v2294, %v2365
        %v2367 = vpop.f32.mrf.mxu0
        %2368 = vdwg.mxu0
        %v2369 = vmax.f32 %v2366, 0.0
        %v2370 = vld [vmem:[%s625] sm:$0xff]
        %v2371 = vld [vmem:[%s625 + $0x8] sm:$0xff]
        %v2372 = vld [vmem:[%s625 + $0x10] sm:$0xff]
        %v2373 = vld [vmem:[%s625 + $0x18] sm:$0xff]
        %v2374 = vld [vmem:[%s625 + $0x20] sm:$0xff]
        %v2375 = vld [vmem:[%s625 + $0x28] sm:$0xff]
        %v2376 = vld [vmem:[%s625 + $0x30] sm:$0xff]
        %v2377 = vld [vmem:[%s625 + $0x38] sm:$0xff]
        %v2378 = vlaneseq
        %v2379 = vshrl.u32 %v2378, 7
        %v2380 = vsub.s32 3, %v2379
        %v2381 = vrot.slane %v639, %v2380
        %vm2382 = vcmask 523264
        %v2384 = vsel %vm2382, %v2369, 0
        %2386 = vmatprep.subr.mxu0 0.0
        %2387 = vmatpush1.msra.mxu0 0.0
        %2388 = vmatprep.subr.mxu0 0.0
        %2389 = vmatpush1.msra.mxu0 0.0
        %2390 = vmatprep.subr.mxu0 0.0
        %2391 = vmatpush1.msra.mxu0 0.0
        %2392 = vmatprep.subr.mxu0 0.0
        %2393 = vmatpush1.msra.mxu0 0.0
        %2394 = vmatprep.subr.mxu0 0.0
        %2395 = vmatpush1.msra.mxu0 0.0
        %2396 = vmatprep.subr.mxu0 0.0
        %2397 = vmatpush1.msra.mxu0 0.0
        %2398 = vmatprep.subr.mxu0 0.0
        %2399 = vmatpush1.msra.mxu0 0.0
        %2400 = vmatprep.subr.mxu0 0.0
        %2401 = vmatpush1.msra.mxu0 0.0
        %2402 = vmatprep.subr.mxu0 0.0
        %2403 = vmatpush1.msra.mxu0 %v2377
        %2404 = vmatprep.subr.mxu0 0.0
        %2405 = vmatpush1.msra.mxu0 %v2376
        %2406 = vmatprep.subr.mxu0 0.0
        %2407 = vmatpush1.msra.mxu0 %v2375
        %2408 = vmatprep.subr.mxu0 0.0
        %2409 = vmatpush1.msra.mxu0 %v2374
        %2410 = vmatprep.subr.mxu0 0.0
        %2411 = vmatpush1.msra.mxu0 %v2373
        %2412 = vmatprep.subr.mxu0 0.0
        %2413 = vmatpush1.msra.mxu0 %v2372
        %2414 = vmatprep.subr.mxu0 0.0
        %2415 = vmatpush1.msra.mxu0 %v2371
        %2416 = vmatprep.subr.mxu0 0.0
        %2417 = vmatpush1.msra.mxu0 %v2370
        %2418 = vmatprep.subr.mxu0 0.0
        %2419 = vmatpush2.msra.mxu0 0.0
        %2420 = vmatprep.subr.mxu0 0.0
        %2421 = vmatpush2.msra.mxu0 0.0
        %2422 = vmatprep.subr.mxu0 0.0
        %2423 = vmatpush2.msra.mxu0 0.0
        %2424 = vmatprep.subr.mxu0 0.0
        %2425 = vmatpush2.msra.mxu0 0.0
        %2426 = vmatprep.subr.mxu0 0.0
        %2427 = vmatpush2.msra.mxu0 0.0
        %2428 = vmatprep.subr.mxu0 0.0
        %2429 = vmatpush2.msra.mxu0 0.0
        %2430 = vmatprep.subr.mxu0 0.0
        %2431 = vmatpush2.msra.mxu0 0.0
        %2432 = vmatprep.subr.mxu0 0.0
        %2433 = vmatpush2.msra.mxu0 0.0
        %2434 = vmatprep.subr.mxu0 0.0
        %2435 = vmatpush2.msra.mxu0 0.0
        %2436 = vmatprep.subr.mxu0 0.0
        %2437 = vmatpush2.msra.mxu0 0.0
        %2438 = vmatprep.subr.mxu0 0.0
        %2439 = vmatpush2.msra.mxu0 0.0
        %2440 = vmatprep.subr.mxu0 0.0
        %2441 = vmatpush2.msra.mxu0 0.0
        %2442 = vmatprep.subr.mxu0 0.0
        %2443 = vmatpush2.msra.mxu0 0.0
        %2444 = vmatprep.subr.mxu0 0.0
        %2445 = vmatpush2.msra.mxu0 0.0
        %2446 = vmatprep.subr.mxu0 0.0
        %2447 = vmatpush2.msra.mxu0 0.0
        %2448 = vmatprep.subr.mxu0 0.0
        %2449 = vmatpush2.msra.mxu0 0.0
        %2450 = vmatprep.mubr.f32.mxu0 0.0
        %2451 = vmatmul.mubr.f32.gmra.mxu0 %v2384
        %v2452 = vpop.f32.mrf.mxu0
        %v2453 = vadd.f32 %v2381, %v2452
        %v2454 = vpop.f32.mrf.mxu0
        %2455 = vdwg.mxu0
        %v2456 = vadd.f32 %v2453, %v2285
        %v2457 = vsel %vm645, %v2456, 0.0
        %2458 = vadd.xlane.f32.xlu0 %v2457
        %v2459 = vpop.xlane.xlu0 %2458
        %v2460 = vmul.f32 %v2459, %v2265
        %v2461 = vsub.f32 %v2456, %v2460
        %v2462 = vmul.f32 %v2461, %v2461
        %v2463 = vsel %vm645, %v2462, 0.0
        %2464 = vadd.xlane.f32.xlu0 %v2463
        %v2465 = vpop.xlane.xlu0 %2464
        %v2466 = vmul.f32 %v2465, %v2265
        %v2467 = vadd.f32 %v2466, 1e-05
        %v2468 = vrsqrt.pop %v2467
        %v2469 = vmul.f32 %v2461, %v2468
        %v2470 = vlaneseq
        %v2471 = vshrl.u32 %v2470, 7
        %v2472 = vsub.s32 4, %v2471
        %v2473 = vrot.slane %v639, %v2472
        %v2474 = vmul.f32 %v2469, %v2473
        %v2475 = vlaneseq
        %v2476 = vshrl.u32 %v2475, 7
        %v2477 = vsub.s32 5, %v2476
        %v2478 = vrot.slane %v639, %v2477
        %v2479 = vadd.f32 %v2474, %v2478
        %2480 = vst.msk [vmem:[#allocation2] sm:$0xff] %vm645, %v2479
        %p2481 = scmp.eq.s32.totalorder %s38, 1
        // Predicated region
        $region85: #{tpu_custom_call.1} parent=59 // pred_check
          %p2482 = pneg %p2481
        $region86: #{tpu_custom_call.1} parent=59 // pred_check_branch
          %2484 = sbr.rel (%p2482) target = $region88
        $region87: #{tpu_custom_call.1} parent=59 // pred_region
          %2485 = vst.msk [vmem:[%s605] sm:$0xff] %vm645, %v2479
        $region88: #{tpu_custom_call.1} parent=59 // pred_fallthru
          _
        %s2486 = sand.u32 %s313, 1
        %s2487 = scalar_lea.sflag [#allocation5], %s2486
        %s2488 = sand.u32 %s313, 1
        %s2489 = smul.addr %s2488, 8
        %s2490 = scalar_lea.vmem [#allocation12], %s2489
        // Predicated region
        $region89: #{tpu_custom_call.1} parent=59 // pred_check
          %p2491 = pneg %p323
        $region90: #{tpu_custom_call.1} parent=59 // pred_check_branch
          %2493 = sbr.rel (%p2491) target = $region92
        $region91: #{tpu_custom_call.1} parent=59 // pred_region
          %s2495 = ssub.s32 128, 128
          %2496 = vsyncadd %s2487, %s2495
          %s2497 = smul.addr %s37, 128
          %s2498 = scalar_lea.hbm %s10, %s2497
          %s2500 = sshll.u32 %s2490, 4
          %s2501 = int_to_ptr.vmem [resolvable:$true] %s2500
          %2503 = dma.vmem_to_hbm [thread:$0]  %s2501, 128, %s2498, %s2487
        $region92: #{tpu_custom_call.1} parent=59 // pred_fallthru
          _
      $region60: #{tpu_custom_call.1} parent=5 // pred_fallthru
        _
      %p2504 = scmp.le.s32.totalorder 2, %s28
      // Predicated region
      $region93: #{tpu_custom_call.1} parent=5 // pred_check
        %p2505 = pneg %p2504
      $region94: #{tpu_custom_call.1} parent=5 // pred_check_branch
        %2507 = sbr.rel (%p2505) target = $region96
      $region95: #{tpu_custom_call.1} parent=5 // pred_region
        %s2508 = ssub.s32 %s28, 2
        // Predicated region
        $region97: #{tpu_custom_call.1} parent=95 // pred_check
          %p2509 = pneg %p329
        $region98: #{tpu_custom_call.1} parent=95 // pred_check_branch
          %2511 = sbr.rel (%p2509) target = $region100
        $region99: #{tpu_custom_call.1} parent=95 // pred_region
          %s2512 = sand.u32 %s314, 1
          %s2513 = scalar_lea.sflag [#allocation5], %s2512
          %s2514 = sand.u32 %s314, 1
          %s2515 = smul.addr %s2514, 8
          %s2516 = scalar_lea.vmem [#allocation12], %s2515
          %2517 = dma.done %s2513, 128
        $region100: #{tpu_custom_call.1} parent=95 // pred_fallthru
          _
      $region96: #{tpu_custom_call.1} parent=5 // pred_fallthru
        _
    $region6: #{tpu_custom_call.1} parent=1 // loop_footer
      %s32 = sadd.s32 1, %s28
    $region7: #{tpu_custom_call.1} parent=1 // loop_footer_branch
      %27 = sbr.rel target = $region3
    $region8: #{tpu_custom_call.1} parent=1 // loop_exit
      _
    %2518 = vsyncpa [#allocation4], 1
    %s2519 = scalar_lea.sflag [#allocation4], 1
    %2520 = vsyncpa %s2519, 1
    %2521 = vsyncpa [#allocation7], 1
    %s2522 = scalar_lea.sflag [#allocation7], 1
    %2523 = vsyncpa %s2522, 1
    %2524 = vsyncpa [#allocation10], 1
    %s2525 = scalar_lea.sflag [#allocation10], 1
    %2526 = vsyncpa %s2525, 1
    %2527 = vsyncpa [#allocation5], 1
    %s2528 = scalar_lea.sflag [#allocation5], 1
    %2529 = vsyncpa %s2528, 1

</llo_original>
